<compile_context>
chip_gen: v6e
topology: v6e:2x2x1
jax: 0.10.0
libtpu: 0.0.40
codegen_flags: <defaults>
</compile_context>

<pallas_src>
import jax
import jax.numpy as jnp
import numpy as np
from jax import lax
from jax.experimental import pallas as pl
from jax.experimental.pallas import tpu as pltpu


def deepdfa_kernel(mexp_ref, state0_ref, w_ref, out_ref):
    # mexp_ref   : (L, TB, A*C) f32  lane-expanded one-hot action masks
    # state0_ref : (TB, C)      f32  initial carry (state in lanes [0, S))
    # w_ref      : (C, A*C)     f32  fused [T_a | T_a@fin | 0] per action block
    # out_ref    : (L, TB, C)   f32  per-step carry (state | reward | 0)
    L = mexp_ref.shape[0]
    C = w_ref.shape[0]
    A = w_ref.shape[1] // C

    W = w_ref[...]                       # hoisted out of the time loop

    def step(i, carry):
        # One matmul computes, for every action a at once:
        #   z[:, a*C:(a+1)*C] = [ state @ T_a | state @ (T_a @ fin) | 0 ... ]
        z = jnp.dot(carry, W, preferred_element_type=jnp.float32)    # (TB, A*C)
        zm = z * mexp_ref[i]             # select this step's action (0/1 masks)
        y = zm[:, 0:C]
        for a in range(1, A):            # A-1 lane-aligned vreg adds
            y = y + zm[:, a * C:(a + 1) * C]
        out_ref[i] = y                   # unmasked, lane-dense (TB, C) store
        # y = [next_state | reward | 0]; reward lanes multiply zero rows of W
        # on the next step, so it can be carried without slicing.
        return y

    lax.fori_loop(0, L, step, state0_ref[...], unroll=True)


def deepdfa_forward(action_seq, trans_prob, fin_matrix, current_state=None):
    """action_seq: (B, L) int; trans_prob: (A, S, S); fin_matrix: (S, O).
    Returns rewards of shape (B, L, O) float32, matching the torch module."""
    B, L = action_seq.shape
    A, S, _ = trans_prob.shape
    O = fin_matrix.shape[1]
    f32 = jnp.float32

    # Lane-dense per-action block width and sublane-padded batch / batch tile.
    C = ((S + O + 127) // 128) * 128
    SUB = 8
    B_pad = ((B + SUB - 1) // SUB) * SUB
    TB = min(B_pad, 256)                     # one MXU pass per step on v6e/v7x
    B_pad = ((B_pad + TB - 1) // TB) * TB

    tp = trans_prob.astype(f32)
    fm = fin_matrix.astype(f32)

    # Fused weight: W[:, a*C:(a+1)*C] = [ T_a | T_a @ fin | 0 ], rows >= S zero.
    tfin = jnp.einsum('ast,to->aso', tp, fm,
                      precision=jax.lax.Precision.HIGHEST)            # (A, S, O)
    blocks = jnp.concatenate([tp, tfin], axis=-1)                     # (A, S, S+O)
    blocks = jnp.pad(blocks, ((0, 0), (0, C - S), (0, C - (S + O))))  # (A, C, C)
    W = jnp.transpose(blocks, (1, 0, 2)).reshape(C, A * C)            # (C, A*C)

    # Precomputed, lane-expanded one-hot masks, time-major, batch padded.
    onehot = jax.nn.one_hot(action_seq.astype(jnp.int32), A, dtype=f32)  # (B,L,A)
    onehot = jnp.transpose(onehot, (1, 0, 2))                            # (L,B,A)
    onehot = jnp.pad(onehot, ((0, 0), (0, B_pad - B), (0, 0)))
    mexp = jnp.broadcast_to(onehot[:, :, :, None],
                            (L, B_pad, A, C)).reshape(L, B_pad, A * C)

    if current_state is None:
        s0 = jnp.zeros((B_pad, C), f32).at[:, 0].set(1.0)
    else:
        s0 = jnp.zeros((B_pad, C), f32).at[:B, :S].set(current_state.astype(f32))

    out_tm = pl.pallas_call(
        deepdfa_kernel,
        out_shape=jax.ShapeDtypeStruct((L, B_pad, C), f32),
        grid=(B_pad // TB,),
        in_specs=[
            pl.BlockSpec((L, TB, A * C), lambda b: (0, b, 0)),   # masks
            pl.BlockSpec((TB, C), lambda b: (b, 0)),             # initial state
            pl.BlockSpec((C, A * C), lambda b: (0, 0)),          # fused weight
        ],
        out_specs=pl.BlockSpec((L, TB, C), lambda b: (0, b, 0)),
        compiler_params=pltpu.CompilerParams(
            dimension_semantics=("parallel",)),   # batch axis: megacore on v7x
    )(mexp, s0, W)

    # Tiny slice + transpose outside the kernel (kernel stores stay lane-dense).
    return jnp.transpose(out_tm[:, :B, S:S + O], (1, 0, 2))      # (B, L, O)


def deepdfa_reference(action_seq, trans_prob, fin_matrix):
    """Pure-JAX reference mirroring the torch forward loop."""
    B, L = action_seq.shape
    S = trans_prob.shape[1]
    hi = jax.lax.Precision.HIGHEST
    s = jnp.zeros((B, S), jnp.float32).at[:, 0].set(1.0)
    rewards = []
    for i in range(L):
        sel = trans_prob[action_seq[:, i]]                        # (B, S, S)
        s = jnp.einsum('bs,bst->bt', s, sel, precision=hi)
        rewards.append(jnp.einsum('bs,so->bo', s, fin_matrix, precision=hi))
    return jnp.stack(rewards, axis=1)                             # (B, L, O)


if __name__ == "__main__":
    # Small shapes consistent with the module:
    #   numb_of_actions=4, numb_of_states=16, numb_of_output=3, batch=2, seq=8
    A, S, O = 4, 16, 3
    B, L = 2, 8

    key = jax.random.PRNGKey(0)
    k1, k2, k3 = jax.random.split(key, 3)
    trans_prob = 0.1 * jax.random.normal(k1, (A, S, S), dtype=jnp.float32)
    fin_matrix = 0.1 * jax.random.normal(k2, (S, O), dtype=jnp.float32)
    action_seq = jax.random.randint(k3, (B, L), 0, A, dtype=jnp.int32)

    rewards = deepdfa_forward(action_seq, trans_prob, fin_matrix)
    rewards = jax.block_until_ready(rewards)

    ref = deepdfa_reference(action_seq, trans_prob, fin_matrix)
    np.testing.assert_allclose(np.asarray(rewards), np.asarray(ref),
                               rtol=1e-5, atol=1e-5)

    # TODO(synk): initFromDfa (parameter re-initialization from an explicit DFA)
    # is training/setup glue, not part of the forward hot path; not ported.
    print("KERNEL_OK")
</pallas_src>

<mosaic_0001>
module attributes {stable_mosaic.version = 11 : i64} {
  func.func @deepdfa_kernel(%arg0: i32, %arg1: memref<8x8x512xf32, #tpu.memory_space<vmem>>, %arg2: memref<8x128xf32, #tpu.memory_space<vmem>>, %arg3: memref<128x512xf32, #tpu.memory_space<vmem>>, %arg4: memref<8x8x128xf32, #tpu.memory_space<vmem>>) attributes {dimension_semantics = [#tpu.dimension_semantics<parallel>], iteration_bounds = array<i64: 1>, scalar_prefetch = 0 : i64, scratch_operands = 0 : i64, tpu.core_type = #tpu.core_type<tc>, window_params = [{transform_indices = @transform_0, window_bounds = array<i64: 8, 8, 512>}, {transform_indices = @transform_1, window_bounds = array<i64: 8, 128>}, {pipeline_mode = #tpu.pipeline_mode<synchronous>, transform_indices = @transform_2, window_bounds = array<i64: 128, 512>}, {transform_indices = @transform_3, window_bounds = array<i64: 8, 8, 128>}]} {
    %c0 = arith.constant 0 : index
    %c0_0 = arith.constant 0 : index
    %0 = vector.load %arg3[%c0, %c0_0] : memref<128x512xf32, #tpu.memory_space<vmem>>, vector<128x512xf32>
    %c0_1 = arith.constant 0 : index
    %c0_2 = arith.constant 0 : index
    %1 = vector.load %arg2[%c0_1, %c0_2] : memref<8x128xf32, #tpu.memory_space<vmem>>, vector<8x128xf32>
    %c0_i32 = arith.constant 0 : i32
    %cst = arith.constant dense<0.000000e+00> : vector<8x512xf32>
    %2 = tpu.matmul %1, %0, %cst {dimension_numbers = #tpu.dot_dimension_numbers<[1], [0], [0], [1], [0, 0, 1, 1], [], []>} : vector<8x128xf32>, vector<128x512xf32>, vector<8x512xf32> -> vector<8x512xf32>
    %3 = arith.index_cast %c0_i32 : i32 to index
    %c0_3 = arith.constant 0 : index
    %c0_4 = arith.constant 0 : index
    %4 = vector.load %arg1[%3, %c0_3, %c0_4] : memref<8x8x512xf32, #tpu.memory_space<vmem>>, vector<1x8x512xf32>
    %5 = vector.shape_cast %4 : vector<1x8x512xf32> to vector<8x512xf32>
    %6 = arith.mulf %2, %5 : vector<8x512xf32>
    %7 = vector.extract_strided_slice %6 {offsets = [0, 0], sizes = [8, 128], strides = [1, 1]} : vector<8x512xf32> to vector<8x128xf32>
    %8 = vector.extract_strided_slice %6 {offsets = [0, 128], sizes = [8, 128], strides = [1, 1]} : vector<8x512xf32> to vector<8x128xf32>
    %9 = arith.addf %7, %8 : vector<8x128xf32>
    %10 = vector.extract_strided_slice %6 {offsets = [0, 256], sizes = [8, 128], strides = [1, 1]} : vector<8x512xf32> to vector<8x128xf32>
    %11 = arith.addf %9, %10 : vector<8x128xf32>
    %12 = vector.extract_strided_slice %6 {offsets = [0, 384], sizes = [8, 128], strides = [1, 1]} : vector<8x512xf32> to vector<8x128xf32>
    %13 = arith.addf %11, %12 : vector<8x128xf32>
    %14 = arith.index_cast %c0_i32 : i32 to index
    %c0_5 = arith.constant 0 : index
    %c0_6 = arith.constant 0 : index
    %15 = vector.load %arg4[%14, %c0_5, %c0_6] : memref<8x8x128xf32, #tpu.memory_space<vmem>>, vector<1x8x128xf32>
    %16 = vector.shape_cast %15 : vector<1x8x128xf32> to vector<8x128xf32>
    %17 = vector.shape_cast %13 : vector<8x128xf32> to vector<1x8x128xf32>
    tpu.vector_store %arg4[%14, %c0_5, %c0_6], %17 {strides = array<i32>} : memref<8x8x128xf32, #tpu.memory_space<vmem>>, vector<1x8x128xf32>,
    %c1_i32 = arith.constant 1 : i32
    %cst_7 = arith.constant dense<0.000000e+00> : vector<8x512xf32>
    %18 = tpu.matmul %13, %0, %cst_7 {dimension_numbers = #tpu.dot_dimension_numbers<[1], [0], [0], [1], [0, 0, 1, 1], [], []>} : vector<8x128xf32>, vector<128x512xf32>, vector<8x512xf32> -> vector<8x512xf32>
    %19 = arith.index_cast %c1_i32 : i32 to index
    %c0_8 = arith.constant 0 : index
    %c0_9 = arith.constant 0 : index
    %20 = vector.load %arg1[%19, %c0_8, %c0_9] : memref<8x8x512xf32, #tpu.memory_space<vmem>>, vector<1x8x512xf32>
    %21 = vector.shape_cast %20 : vector<1x8x512xf32> to vector<8x512xf32>
    %22 = arith.mulf %18, %21 : vector<8x512xf32>
    %23 = vector.extract_strided_slice %22 {offsets = [0, 0], sizes = [8, 128], strides = [1, 1]} : vector<8x512xf32> to vector<8x128xf32>
    %24 = vector.extract_strided_slice %22 {offsets = [0, 128], sizes = [8, 128], strides = [1, 1]} : vector<8x512xf32> to vector<8x128xf32>
    %25 = arith.addf %23, %24 : vector<8x128xf32>
    %26 = vector.extract_strided_slice %22 {offsets = [0, 256], sizes = [8, 128], strides = [1, 1]} : vector<8x512xf32> to vector<8x128xf32>
    %27 = arith.addf %25, %26 : vector<8x128xf32>
    %28 = vector.extract_strided_slice %22 {offsets = [0, 384], sizes = [8, 128], strides = [1, 1]} : vector<8x512xf32> to vector<8x128xf32>
    %29 = arith.addf %27, %28 : vector<8x128xf32>
    %30 = arith.index_cast %c1_i32 : i32 to index
    %c0_10 = arith.constant 0 : index
    %c0_11 = arith.constant 0 : index
    %31 = vector.load %arg4[%30, %c0_10, %c0_11] : memref<8x8x128xf32, #tpu.memory_space<vmem>>, vector<1x8x128xf32>
    %32 = vector.shape_cast %31 : vector<1x8x128xf32> to vector<8x128xf32>
    %33 = vector.shape_cast %29 : vector<8x128xf32> to vector<1x8x128xf32>
    tpu.vector_store %arg4[%30, %c0_10, %c0_11], %33 {strides = array<i32>} : memref<8x8x128xf32, #tpu.memory_space<vmem>>, vector<1x8x128xf32>,
    %c2_i32 = arith.constant 2 : i32
    %cst_12 = arith.constant dense<0.000000e+00> : vector<8x512xf32>
    %34 = tpu.matmul %29, %0, %cst_12 {dimension_numbers = #tpu.dot_dimension_numbers<[1], [0], [0], [1], [0, 0, 1, 1], [], []>} : vector<8x128xf32>, vector<128x512xf32>, vector<8x512xf32> -> vector<8x512xf32>
    %35 = arith.index_cast %c2_i32 : i32 to index
    %c0_13 = arith.constant 0 : index
    %c0_14 = arith.constant 0 : index
    %36 = vector.load %arg1[%35, %c0_13, %c0_14] : memref<8x8x512xf32, #tpu.memory_space<vmem>>, vector<1x8x512xf32>
    %37 = vector.shape_cast %36 : vector<1x8x512xf32> to vector<8x512xf32>
    %38 = arith.mulf %34, %37 : vector<8x512xf32>
    %39 = vector.extract_strided_slice %38 {offsets = [0, 0], sizes = [8, 128], strides = [1, 1]} : vector<8x512xf32> to vector<8x128xf32>
    %40 = vector.extract_strided_slice %38 {offsets = [0, 128], sizes = [8, 128], strides = [1, 1]} : vector<8x512xf32> to vector<8x128xf32>
    %41 = arith.addf %39, %40 : vector<8x128xf32>
    %42 = vector.extract_strided_slice %38 {offsets = [0, 256], sizes = [8, 128], strides = [1, 1]} : vector<8x512xf32> to vector<8x128xf32>
    %43 = arith.addf %41, %42 : vector<8x128xf32>
    %44 = vector.extract_strided_slice %38 {offsets = [0, 384], sizes = [8, 128], strides = [1, 1]} : vector<8x512xf32> to vector<8x128xf32>
    %45 = arith.addf %43, %44 : vector<8x128xf32>
    %46 = arith.index_cast %c2_i32 : i32 to index
    %c0_15 = arith.constant 0 : index
    %c0_16 = arith.constant 0 : index
    %47 = vector.load %arg4[%46, %c0_15, %c0_16] : memref<8x8x128xf32, #tpu.memory_space<vmem>>, vector<1x8x128xf32>
    %48 = vector.shape_cast %47 : vector<1x8x128xf32> to vector<8x128xf32>
    %49 = vector.shape_cast %45 : vector<8x128xf32> to vector<1x8x128xf32>
    tpu.vector_store %arg4[%46, %c0_15, %c0_16], %49 {strides = array<i32>} : memref<8x8x128xf32, #tpu.memory_space<vmem>>, vector<1x8x128xf32>,
    %c3_i32 = arith.constant 3 : i32
    %cst_17 = arith.constant dense<0.000000e+00> : vector<8x512xf32>
    %50 = tpu.matmul %45, %0, %cst_17 {dimension_numbers = #tpu.dot_dimension_numbers<[1], [0], [0], [1], [0, 0, 1, 1], [], []>} : vector<8x128xf32>, vector<128x512xf32>, vector<8x512xf32> -> vector<8x512xf32>
    %51 = arith.index_cast %c3_i32 : i32 to index
    %c0_18 = arith.constant 0 : index
    %c0_19 = arith.constant 0 : index
    %52 = vector.load %arg1[%51, %c0_18, %c0_19] : memref<8x8x512xf32, #tpu.memory_space<vmem>>, vector<1x8x512xf32>
    %53 = vector.shape_cast %52 : vector<1x8x512xf32> to vector<8x512xf32>
    %54 = arith.mulf %50, %53 : vector<8x512xf32>
    %55 = vector.extract_strided_slice %54 {offsets = [0, 0], sizes = [8, 128], strides = [1, 1]} : vector<8x512xf32> to vector<8x128xf32>
    %56 = vector.extract_strided_slice %54 {offsets = [0, 128], sizes = [8, 128], strides = [1, 1]} : vector<8x512xf32> to vector<8x128xf32>
    %57 = arith.addf %55, %56 : vector<8x128xf32>
    %58 = vector.extract_strided_slice %54 {offsets = [0, 256], sizes = [8, 128], strides = [1, 1]} : vector<8x512xf32> to vector<8x128xf32>
    %59 = arith.addf %57, %58 : vector<8x128xf32>
    %60 = vector.extract_strided_slice %54 {offsets = [0, 384], sizes = [8, 128], strides = [1, 1]} : vector<8x512xf32> to vector<8x128xf32>
    %61 = arith.addf %59, %60 : vector<8x128xf32>
    %62 = arith.index_cast %c3_i32 : i32 to index
    %c0_20 = arith.constant 0 : index
    %c0_21 = arith.constant 0 : index
    %63 = vector.load %arg4[%62, %c0_20, %c0_21] : memref<8x8x128xf32, #tpu.memory_space<vmem>>, vector<1x8x128xf32>
    %64 = vector.shape_cast %63 : vector<1x8x128xf32> to vector<8x128xf32>
    %65 = vector.shape_cast %61 : vector<8x128xf32> to vector<1x8x128xf32>
    tpu.vector_store %arg4[%62, %c0_20, %c0_21], %65 {strides = array<i32>} : memref<8x8x128xf32, #tpu.memory_space<vmem>>, vector<1x8x128xf32>,
    %c4_i32 = arith.constant 4 : i32
    %cst_22 = arith.constant dense<0.000000e+00> : vector<8x512xf32>
    %66 = tpu.matmul %61, %0, %cst_22 {dimension_numbers = #tpu.dot_dimension_numbers<[1], [0], [0], [1], [0, 0, 1, 1], [], []>} : vector<8x128xf32>, vector<128x512xf32>, vector<8x512xf32> -> vector<8x512xf32>
    %67 = arith.index_cast %c4_i32 : i32 to index
    %c0_23 = arith.constant 0 : index
    %c0_24 = arith.constant 0 : index
    %68 = vector.load %arg1[%67, %c0_23, %c0_24] : memref<8x8x512xf32, #tpu.memory_space<vmem>>, vector<1x8x512xf32>
    %69 = vector.shape_cast %68 : vector<1x8x512xf32> to vector<8x512xf32>
    %70 = arith.mulf %66, %69 : vector<8x512xf32>
    %71 = vector.extract_strided_slice %70 {offsets = [0, 0], sizes = [8, 128], strides = [1, 1]} : vector<8x512xf32> to vector<8x128xf32>
    %72 = vector.extract_strided_slice %70 {offsets = [0, 128], sizes = [8, 128], strides = [1, 1]} : vector<8x512xf32> to vector<8x128xf32>
    %73 = arith.addf %71, %72 : vector<8x128xf32>
    %74 = vector.extract_strided_slice %70 {offsets = [0, 256], sizes = [8, 128], strides = [1, 1]} : vector<8x512xf32> to vector<8x128xf32>
    %75 = arith.addf %73, %74 : vector<8x128xf32>
    %76 = vector.extract_strided_slice %70 {offsets = [0, 384], sizes = [8, 128], strides = [1, 1]} : vector<8x512xf32> to vector<8x128xf32>
    %77 = arith.addf %75, %76 : vector<8x128xf32>
    %78 = arith.index_cast %c4_i32 : i32 to index
    %c0_25 = arith.constant 0 : index
    %c0_26 = arith.constant 0 : index
    %79 = vector.load %arg4[%78, %c0_25, %c0_26] : memref<8x8x128xf32, #tpu.memory_space<vmem>>, vector<1x8x128xf32>
    %80 = vector.shape_cast %79 : vector<1x8x128xf32> to vector<8x128xf32>
    %81 = vector.shape_cast %77 : vector<8x128xf32> to vector<1x8x128xf32>
    tpu.vector_store %arg4[%78, %c0_25, %c0_26], %81 {strides = array<i32>} : memref<8x8x128xf32, #tpu.memory_space<vmem>>, vector<1x8x128xf32>,
    %c5_i32 = arith.constant 5 : i32
    %cst_27 = arith.constant dense<0.000000e+00> : vector<8x512xf32>
    %82 = tpu.matmul %77, %0, %cst_27 {dimension_numbers = #tpu.dot_dimension_numbers<[1], [0], [0], [1], [0, 0, 1, 1], [], []>} : vector<8x128xf32>, vector<128x512xf32>, vector<8x512xf32> -> vector<8x512xf32>
    %83 = arith.index_cast %c5_i32 : i32 to index
    %c0_28 = arith.constant 0 : index
    %c0_29 = arith.constant 0 : index
    %84 = vector.load %arg1[%83, %c0_28, %c0_29] : memref<8x8x512xf32, #tpu.memory_space<vmem>>, vector<1x8x512xf32>
    %85 = vector.shape_cast %84 : vector<1x8x512xf32> to vector<8x512xf32>
    %86 = arith.mulf %82, %85 : vector<8x512xf32>
    %87 = vector.extract_strided_slice %86 {offsets = [0, 0], sizes = [8, 128], strides = [1, 1]} : vector<8x512xf32> to vector<8x128xf32>
    %88 = vector.extract_strided_slice %86 {offsets = [0, 128], sizes = [8, 128], strides = [1, 1]} : vector<8x512xf32> to vector<8x128xf32>
    %89 = arith.addf %87, %88 : vector<8x128xf32>
    %90 = vector.extract_strided_slice %86 {offsets = [0, 256], sizes = [8, 128], strides = [1, 1]} : vector<8x512xf32> to vector<8x128xf32>
    %91 = arith.addf %89, %90 : vector<8x128xf32>
    %92 = vector.extract_strided_slice %86 {offsets = [0, 384], sizes = [8, 128], strides = [1, 1]} : vector<8x512xf32> to vector<8x128xf32>
    %93 = arith.addf %91, %92 : vector<8x128xf32>
    %94 = arith.index_cast %c5_i32 : i32 to index
    %c0_30 = arith.constant 0 : index
    %c0_31 = arith.constant 0 : index
    %95 = vector.load %arg4[%94, %c0_30, %c0_31] : memref<8x8x128xf32, #tpu.memory_space<vmem>>, vector<1x8x128xf32>
    %96 = vector.shape_cast %95 : vector<1x8x128xf32> to vector<8x128xf32>
    %97 = vector.shape_cast %93 : vector<8x128xf32> to vector<1x8x128xf32>
    tpu.vector_store %arg4[%94, %c0_30, %c0_31], %97 {strides = array<i32>} : memref<8x8x128xf32, #tpu.memory_space<vmem>>, vector<1x8x128xf32>,
    %c6_i32 = arith.constant 6 : i32
    %cst_32 = arith.constant dense<0.000000e+00> : vector<8x512xf32>
    %98 = tpu.matmul %93, %0, %cst_32 {dimension_numbers = #tpu.dot_dimension_numbers<[1], [0], [0], [1], [0, 0, 1, 1], [], []>} : vector<8x128xf32>, vector<128x512xf32>, vector<8x512xf32> -> vector<8x512xf32>
    %99 = arith.index_cast %c6_i32 : i32 to index
    %c0_33 = arith.constant 0 : index
    %c0_34 = arith.constant 0 : index
    %100 = vector.load %arg1[%99, %c0_33, %c0_34] : memref<8x8x512xf32, #tpu.memory_space<vmem>>, vector<1x8x512xf32>
    %101 = vector.shape_cast %100 : vector<1x8x512xf32> to vector<8x512xf32>
    %102 = arith.mulf %98, %101 : vector<8x512xf32>
    %103 = vector.extract_strided_slice %102 {offsets = [0, 0], sizes = [8, 128], strides = [1, 1]} : vector<8x512xf32> to vector<8x128xf32>
    %104 = vector.extract_strided_slice %102 {offsets = [0, 128], sizes = [8, 128], strides = [1, 1]} : vector<8x512xf32> to vector<8x128xf32>
    %105 = arith.addf %103, %104 : vector<8x128xf32>
    %106 = vector.extract_strided_slice %102 {offsets = [0, 256], sizes = [8, 128], strides = [1, 1]} : vector<8x512xf32> to vector<8x128xf32>
    %107 = arith.addf %105, %106 : vector<8x128xf32>
    %108 = vector.extract_strided_slice %102 {offsets = [0, 384], sizes = [8, 128], strides = [1, 1]} : vector<8x512xf32> to vector<8x128xf32>
    %109 = arith.addf %107, %108 : vector<8x128xf32>
    %110 = arith.index_cast %c6_i32 : i32 to index
    %c0_35 = arith.constant 0 : index
    %c0_36 = arith.constant 0 : index
    %111 = vector.load %arg4[%110, %c0_35, %c0_36] : memref<8x8x128xf32, #tpu.memory_space<vmem>>, vector<1x8x128xf32>
    %112 = vector.shape_cast %111 : vector<1x8x128xf32> to vector<8x128xf32>
    %113 = vector.shape_cast %109 : vector<8x128xf32> to vector<1x8x128xf32>
    tpu.vector_store %arg4[%110, %c0_35, %c0_36], %113 {strides = array<i32>} : memref<8x8x128xf32, #tpu.memory_space<vmem>>, vector<1x8x128xf32>,
    %c7_i32 = arith.constant 7 : i32
    %cst_37 = arith.constant dense<0.000000e+00> : vector<8x512xf32>
    %114 = tpu.matmul %109, %0, %cst_37 {dimension_numbers = #tpu.dot_dimension_numbers<[1], [0], [0], [1], [0, 0, 1, 1], [], []>} : vector<8x128xf32>, vector<128x512xf32>, vector<8x512xf32> -> vector<8x512xf32>
    %115 = arith.index_cast %c7_i32 : i32 to index
    %c0_38 = arith.constant 0 : index
    %c0_39 = arith.constant 0 : index
    %116 = vector.load %arg1[%115, %c0_38, %c0_39] : memref<8x8x512xf32, #tpu.memory_space<vmem>>, vector<1x8x512xf32>
    %117 = vector.shape_cast %116 : vector<1x8x512xf32> to vector<8x512xf32>
    %118 = arith.mulf %114, %117 : vector<8x512xf32>
    %119 = vector.extract_strided_slice %118 {offsets = [0, 0], sizes = [8, 128], strides = [1, 1]} : vector<8x512xf32> to vector<8x128xf32>
    %120 = vector.extract_strided_slice %118 {offsets = [0, 128], sizes = [8, 128], strides = [1, 1]} : vector<8x512xf32> to vector<8x128xf32>
    %121 = arith.addf %119, %120 : vector<8x128xf32>
    %122 = vector.extract_strided_slice %118 {offsets = [0, 256], sizes = [8, 128], strides = [1, 1]} : vector<8x512xf32> to vector<8x128xf32>
    %123 = arith.addf %121, %122 : vector<8x128xf32>
    %124 = vector.extract_strided_slice %118 {offsets = [0, 384], sizes = [8, 128], strides = [1, 1]} : vector<8x512xf32> to vector<8x128xf32>
    %125 = arith.addf %123, %124 : vector<8x128xf32>
    %126 = arith.index_cast %c7_i32 : i32 to index
    %c0_40 = arith.constant 0 : index
    %c0_41 = arith.constant 0 : index
    %127 = vector.load %arg4[%126, %c0_40, %c0_41] : memref<8x8x128xf32, #tpu.memory_space<vmem>>, vector<1x8x128xf32>
    %128 = vector.shape_cast %127 : vector<1x8x128xf32> to vector<8x128xf32>
    %129 = vector.shape_cast %125 : vector<8x128xf32> to vector<1x8x128xf32>
    tpu.vector_store %arg4[%126, %c0_40, %c0_41], %129 {strides = array<i32>} : memref<8x8x128xf32, #tpu.memory_space<vmem>>, vector<1x8x128xf32>,
    %c8_i32 = arith.constant 8 : i32
    return
  }
  func.func @transform_0(%arg0: i32) -> (i32, i32, i32) {
    %c0_i32 = arith.constant 0 : i32
    %c0_i32_0 = arith.constant 0 : i32
    %c0_i32_1 = arith.constant 0 : i32
    return %c0_i32, %arg0, %c0_i32_0 : i32, i32, i32
  }
  func.func @transform_1(%arg0: i32) -> (i32, i32) {
    %c0_i32 = arith.constant 0 : i32
    %c0_i32_0 = arith.constant 0 : i32
    return %arg0, %c0_i32 : i32, i32
  }
  func.func @transform_2(%arg0: i32) -> (i32, i32) {
    %c0_i32 = arith.constant 0 : i32
    %c0_i32_0 = arith.constant 0 : i32
    %c0_i32_1 = arith.constant 0 : i32
    return %c0_i32, %c0_i32_0 : i32, i32
  }
  func.func @transform_3(%arg0: i32) -> (i32, i32, i32) {
    %c0_i32 = arith.constant 0 : i32
    %c0_i32_0 = arith.constant 0 : i32
    %c0_i32_1 = arith.constant 0 : i32
    return %c0_i32, %arg0, %c0_i32_0 : i32, i32, i32
  }
}

</mosaic_0001>

<llo_original>
// kernel: tpu_custom_call.1
$region0: #{tpu_custom_call.1}
  #allocation0 [shape = 'u32[]', space=smem, size = 0x4, offset = 0x4, fixed_abs, tag = 'smem constant byte address 0x4 - core index']
  #allocation1 [shape = 'u32[144,128]{1,0:T(1,128)}', space=vmem, size = 0x12000, scoped, tag = 'internal scratch']
  %s0 = inlined_call_operand.hbm [shape: f32[8,8,512], index: 0, kind: input, shape index: {}]
  %s1 = inlined_call_operand.hbm [shape: f32[8,128], index: 1, kind: input, shape index: {}]
  %s2 = inlined_call_operand.hbm [shape: f32[128,512], index: 2, kind: input, shape index: {}]
  %s3 = inlined_call_operand.hbm [shape: f32[8,8,128], index: 3, kind: output, shape index: {}]
  %s4 = sld [smem:[#allocation0]]
  $region34: #{tpu_custom_call.1} parent=0
    _
  %s6 = ssub.s32 1, %s4
  %s7 = scalar_select 0, %s6, %s4
  $region1: #{tpu_custom_call.1} parent=0
    #allocation2 [shape = 'u8[131072]{0}', space=vmem, size = 0x20000, scoped, tag = 'input window, operand 0, single buffered']
    #allocation3 [shape = 's32[1]{0}', space=sflag, size = 0x4, scoped, tag = 'scoped memory for tpu_custom_call.1']
    #allocation4 [shape = 's32[1]{0}', space=sflag, size = 0x4, scoped, tag = 'scoped memory for tpu_custom_call.1']
    #allocation5 [shape = 'u8[4096]{0}', space=vmem, size = 0x1000, scoped, tag = 'input window, operand 1, single buffered']
    #allocation6 [shape = 's32[1]{0}', space=sflag, size = 0x4, scoped, tag = 'scoped memory for tpu_custom_call.1']
    #allocation7 [shape = 'u8[262144]{0}', space=vmem, size = 0x40000, scoped, tag = 'input window, operand 2, single buffered']
    #allocation8 [shape = 'u8[32768]{0}', space=vmem, size = 0x8000, scoped, tag = 'output window, operand 0, single buffered']
    %8 = vsyncpa [#allocation3], 0
    %9 = vsyncpa [#allocation6], 0
    %10 = vsyncpa [#allocation4], 0
    // Predicated region
    $region2: #{tpu_custom_call.1} parent=1 // pred_check
      _
    $region3: #{tpu_custom_call.1} parent=1 // pred_check_branch
      %12 = sbr.rel (0) target = $region5
    $region4: #{tpu_custom_call.1} parent=1 // pred_region
      %s14 = ssub.s32 4096, 4096
      %15 = vsyncadd [#allocation3], %s14
      %s16 = sshll.u32 [#allocation2], 4
      %s17 = int_to_ptr.vmem [resolvable:$true] %s16
      %22 = dma.hbm_to_vmem [thread:$0]  %s0, 4096, %s17, [#allocation3], 512, 512, 32
    $region5: #{tpu_custom_call.1} parent=1 // pred_fallthru
      _
    // Predicated region
    $region6: #{tpu_custom_call.1} parent=1 // pred_check
      _
    $region7: #{tpu_custom_call.1} parent=1 // pred_check_branch
      %24 = sbr.rel (0) target = $region9
    $region8: #{tpu_custom_call.1} parent=1 // pred_region
      %s26 = ssub.s32 128, 128
      %27 = vsyncadd [#allocation6], %s26
      %s29 = sshll.u32 [#allocation5], 4
      %s30 = int_to_ptr.vmem [resolvable:$true] %s29
      %32 = dma.hbm_to_vmem [thread:$0]  %s1, 128, %s30, [#allocation6]
    $region9: #{tpu_custom_call.1} parent=1 // pred_fallthru
      _
    // Predicated region
    $region10: #{tpu_custom_call.1} parent=1 // pred_check
      _
    $region11: #{tpu_custom_call.1} parent=1 // pred_check_branch
      %34 = sbr.rel (0) target = $region13
    $region12: #{tpu_custom_call.1} parent=1 // pred_region
      %s36 = ssub.s32 8192, 8192
      %37 = vsyncadd [#allocation6], %s36
      %s38 = sshll.u32 [#allocation7], 4
      %s39 = int_to_ptr.vmem [resolvable:$true] %s38
      %44 = dma.hbm_to_vmem [thread:$0]  %s2, 8192, %s39, [#allocation6], 512, 512, 32
    $region13: #{tpu_custom_call.1} parent=1 // pred_fallthru
      _
    // Predicated region
    $region14: #{tpu_custom_call.1} parent=1 // pred_check
      _
    $region15: #{tpu_custom_call.1} parent=1 // pred_check_branch
      %46 = sbr.rel (0) target = $region17
    $region16: #{tpu_custom_call.1} parent=1 // pred_region
      %47 = dma.done [#allocation3], 4096
    $region17: #{tpu_custom_call.1} parent=1 // pred_fallthru
      _
    // Predicated region
    $region18: #{tpu_custom_call.1} parent=1 // pred_check
      _
    $region19: #{tpu_custom_call.1} parent=1 // pred_check_branch
      %49 = sbr.rel (0) target = $region21
    $region20: #{tpu_custom_call.1} parent=1 // pred_region
      %50 = dma.done [#allocation6], 128
    $region21: #{tpu_custom_call.1} parent=1 // pred_fallthru
      _
    // Predicated region
    $region22: #{tpu_custom_call.1} parent=1 // pred_check
      _
    $region23: #{tpu_custom_call.1} parent=1 // pred_check_branch
      %52 = sbr.rel (0) target = $region25
    $region24: #{tpu_custom_call.1} parent=1 // pred_region
      %53 = dma.done [#allocation6], 8192
    $region25: #{tpu_custom_call.1} parent=1 // pred_fallthru
      _
    %v54 = vld [vmem:[#allocation7] sm:$0xff]
    %v55 = vld [vmem:[#allocation7 + $0x8] sm:$0xff]
    %v56 = vld [vmem:[#allocation7 + $0x10] sm:$0xff]
    %v57 = vld [vmem:[#allocation7 + $0x18] sm:$0xff]
    %v58 = vld [vmem:[#allocation7 + $0x20] sm:$0xff]
    %v59 = vld [vmem:[#allocation7 + $0x28] sm:$0xff]
    %v60 = vld [vmem:[#allocation7 + $0x30] sm:$0xff]
    %v61 = vld [vmem:[#allocation7 + $0x38] sm:$0xff]
    %v62 = vld [vmem:[#allocation7 + $0x40] sm:$0xff]
    %v63 = vld [vmem:[#allocation7 + $0x48] sm:$0xff]
    %v64 = vld [vmem:[#allocation7 + $0x50] sm:$0xff]
    %v65 = vld [vmem:[#allocation7 + $0x58] sm:$0xff]
    %v66 = vld [vmem:[#allocation7 + $0x60] sm:$0xff]
    %v67 = vld [vmem:[#allocation7 + $0x68] sm:$0xff]
    %v68 = vld [vmem:[#allocation7 + $0x70] sm:$0xff]
    %v69 = vld [vmem:[#allocation7 + $0x78] sm:$0xff]
    %v70 = vld [vmem:[#allocation7 + $0x80] sm:$0xff]
    %v71 = vld [vmem:[#allocation7 + $0x88] sm:$0xff]
    %v72 = vld [vmem:[#allocation7 + $0x90] sm:$0xff]
    %v73 = vld [vmem:[#allocation7 + $0x98] sm:$0xff]
    %v74 = vld [vmem:[#allocation7 + $0xa0] sm:$0xff]
    %v75 = vld [vmem:[#allocation7 + $0xa8] sm:$0xff]
    %v76 = vld [vmem:[#allocation7 + $0xb0] sm:$0xff]
    %v77 = vld [vmem:[#allocation7 + $0xb8] sm:$0xff]
    %v78 = vld [vmem:[#allocation7 + $0xc0] sm:$0xff]
    %v79 = vld [vmem:[#allocation7 + $0xc8] sm:$0xff]
    %v80 = vld [vmem:[#allocation7 + $0xd0] sm:$0xff]
    %v81 = vld [vmem:[#allocation7 + $0xd8] sm:$0xff]
    %v82 = vld [vmem:[#allocation7 + $0xe0] sm:$0xff]
    %v83 = vld [vmem:[#allocation7 + $0xe8] sm:$0xff]
    %v84 = vld [vmem:[#allocation7 + $0xf0] sm:$0xff]
    %v85 = vld [vmem:[#allocation7 + $0xf8] sm:$0xff]
    %v86 = vld [vmem:[#allocation7 + $0x100] sm:$0xff]
    %v87 = vld [vmem:[#allocation7 + $0x108] sm:$0xff]
    %v88 = vld [vmem:[#allocation7 + $0x110] sm:$0xff]
    %v89 = vld [vmem:[#allocation7 + $0x118] sm:$0xff]
    %v90 = vld [vmem:[#allocation7 + $0x120] sm:$0xff]
    %v91 = vld [vmem:[#allocation7 + $0x128] sm:$0xff]
    %v92 = vld [vmem:[#allocation7 + $0x130] sm:$0xff]
    %v93 = vld [vmem:[#allocation7 + $0x138] sm:$0xff]
    %v94 = vld [vmem:[#allocation7 + $0x140] sm:$0xff]
    %v95 = vld [vmem:[#allocation7 + $0x148] sm:$0xff]
    %v96 = vld [vmem:[#allocation7 + $0x150] sm:$0xff]
    %v97 = vld [vmem:[#allocation7 + $0x158] sm:$0xff]
    %v98 = vld [vmem:[#allocation7 + $0x160] sm:$0xff]
    %v99 = vld [vmem:[#allocation7 + $0x168] sm:$0xff]
    %v100 = vld [vmem:[#allocation7 + $0x170] sm:$0xff]
    %v101 = vld [vmem:[#allocation7 + $0x178] sm:$0xff]
    %v102 = vld [vmem:[#allocation7 + $0x180] sm:$0xff]
    %v103 = vld [vmem:[#allocation7 + $0x188] sm:$0xff]
    %v104 = vld [vmem:[#allocation7 + $0x190] sm:$0xff]
    %v105 = vld [vmem:[#allocation7 + $0x198] sm:$0xff]
    %v106 = vld [vmem:[#allocation7 + $0x1a0] sm:$0xff]
    %v107 = vld [vmem:[#allocation7 + $0x1a8] sm:$0xff]
    %v108 = vld [vmem:[#allocation7 + $0x1b0] sm:$0xff]
    %v109 = vld [vmem:[#allocation7 + $0x1b8] sm:$0xff]
    %v110 = vld [vmem:[#allocation7 + $0x1c0] sm:$0xff]
    %v111 = vld [vmem:[#allocation7 + $0x1c8] sm:$0xff]
    %v112 = vld [vmem:[#allocation7 + $0x1d0] sm:$0xff]
    %v113 = vld [vmem:[#allocation7 + $0x1d8] sm:$0xff]
    %v114 = vld [vmem:[#allocation7 + $0x1e0] sm:$0xff]
    %v115 = vld [vmem:[#allocation7 + $0x1e8] sm:$0xff]
    %v116 = vld [vmem:[#allocation7 + $0x1f0] sm:$0xff]
    %v117 = vld [vmem:[#allocation7 + $0x1f8] sm:$0xff]
    %v118 = vld [vmem:[#allocation5] sm:$0xff]
    %119 = vmatprep.subr.mxu0 %v115
    %120 = vmatpush1.msra.mxu0 %v114
    %121 = vmatprep.subr.mxu0 %v111
    %122 = vmatpush1.msra.mxu0 %v110
    %123 = vmatprep.subr.mxu0 %v107
    %124 = vmatpush1.msra.mxu0 %v106
    %125 = vmatprep.subr.mxu0 %v103
    %126 = vmatpush1.msra.mxu0 %v102
    %127 = vmatprep.subr.mxu0 %v99
    %128 = vmatpush1.msra.mxu0 %v98
    %129 = vmatprep.subr.mxu0 %v95
    %130 = vmatpush1.msra.mxu0 %v94
    %131 = vmatprep.subr.mxu0 %v91
    %132 = vmatpush1.msra.mxu0 %v90
    %133 = vmatprep.subr.mxu0 %v87
    %134 = vmatpush1.msra.mxu0 %v86
    %135 = vmatprep.subr.mxu0 %v83
    %136 = vmatpush1.msra.mxu0 %v82
    %137 = vmatprep.subr.mxu0 %v79
    %138 = vmatpush1.msra.mxu0 %v78
    %139 = vmatprep.subr.mxu0 %v75
    %140 = vmatpush1.msra.mxu0 %v74
    %141 = vmatprep.subr.mxu0 %v71
    %142 = vmatpush1.msra.mxu0 %v70
    %143 = vmatprep.subr.mxu0 %v67
    %144 = vmatpush1.msra.mxu0 %v66
    %145 = vmatprep.subr.mxu0 %v63
    %146 = vmatpush1.msra.mxu0 %v62
    %147 = vmatprep.subr.mxu0 %v59
    %148 = vmatpush1.msra.mxu0 %v58
    %149 = vmatprep.subr.mxu0 %v55
    %150 = vmatpush1.msra.mxu0 %v54
    %151 = vmatprep.subr.mxu0 0.0
    %152 = vmatpush2.msra.mxu0 0.0
    %153 = vmatprep.subr.mxu0 0.0
    %154 = vmatpush2.msra.mxu0 0.0
    %155 = vmatprep.subr.mxu0 0.0
    %156 = vmatpush2.msra.mxu0 0.0
    %157 = vmatprep.subr.mxu0 0.0
    %158 = vmatpush2.msra.mxu0 0.0
    %159 = vmatprep.subr.mxu0 0.0
    %160 = vmatpush2.msra.mxu0 0.0
    %161 = vmatprep.subr.mxu0 0.0
    %162 = vmatpush2.msra.mxu0 0.0
    %163 = vmatprep.subr.mxu0 0.0
    %164 = vmatpush2.msra.mxu0 0.0
    %165 = vmatprep.subr.mxu0 0.0
    %166 = vmatpush2.msra.mxu0 0.0
    %167 = vmatprep.subr.mxu0 0.0
    %168 = vmatpush2.msra.mxu0 0.0
    %169 = vmatprep.subr.mxu0 0.0
    %170 = vmatpush2.msra.mxu0 0.0
    %171 = vmatprep.subr.mxu0 0.0
    %172 = vmatpush2.msra.mxu0 0.0
    %173 = vmatprep.subr.mxu0 0.0
    %174 = vmatpush2.msra.mxu0 0.0
    %175 = vmatprep.subr.mxu0 0.0
    %176 = vmatpush2.msra.mxu0 0.0
    %177 = vmatprep.subr.mxu0 0.0
    %178 = vmatpush2.msra.mxu0 0.0
    %179 = vmatprep.subr.mxu0 0.0
    %180 = vmatpush2.msra.mxu0 0.0
    %181 = vmatprep.subr.mxu0 0.0
    %182 = vmatpush2.msra.mxu0 0.0
    %183 = vmatprep.mubr.f32.mxu0 0.0
    %184 = vmatmul.mubr.f32.gmra.mxu0 %v118
    %v185 = vpop.f32.mrf.mxu0
    %v186 = vadd.f32 0.0, %v185
    %v187 = vpop.f32.mrf.mxu0
    %v188 = vadd.f32 0.0, %v187
    %189 = vdwg.mxu0
    %190 = vmatprep.subr.mxu0 %v117
    %191 = vmatpush1.msra.mxu0 %v116
    %192 = vmatprep.subr.mxu0 %v113
    %193 = vmatpush1.msra.mxu0 %v112
    %194 = vmatprep.subr.mxu0 %v109
    %195 = vmatpush1.msra.mxu0 %v108
    %196 = vmatprep.subr.mxu0 %v105
    %197 = vmatpush1.msra.mxu0 %v104
    %198 = vmatprep.subr.mxu0 %v101
    %199 = vmatpush1.msra.mxu0 %v100
    %200 = vmatprep.subr.mxu0 %v97
    %201 = vmatpush1.msra.mxu0 %v96
    %202 = vmatprep.subr.mxu0 %v93
    %203 = vmatpush1.msra.mxu0 %v92
    %204 = vmatprep.subr.mxu0 %v89
    %205 = vmatpush1.msra.mxu0 %v88
    %206 = vmatprep.subr.mxu0 %v85
    %207 = vmatpush1.msra.mxu0 %v84
    %208 = vmatprep.subr.mxu0 %v81
    %209 = vmatpush1.msra.mxu0 %v80
    %210 = vmatprep.subr.mxu0 %v77
    %211 = vmatpush1.msra.mxu0 %v76
    %212 = vmatprep.subr.mxu0 %v73
    %213 = vmatpush1.msra.mxu0 %v72
    %214 = vmatprep.subr.mxu0 %v69
    %215 = vmatpush1.msra.mxu0 %v68
    %216 = vmatprep.subr.mxu0 %v65
    %217 = vmatpush1.msra.mxu0 %v64
    %218 = vmatprep.subr.mxu0 %v61
    %219 = vmatpush1.msra.mxu0 %v60
    %220 = vmatprep.subr.mxu0 %v57
    %221 = vmatpush1.msra.mxu0 %v56
    %222 = vmatprep.subr.mxu0 0.0
    %223 = vmatpush2.msra.mxu0 0.0
    %224 = vmatprep.subr.mxu0 0.0
    %225 = vmatpush2.msra.mxu0 0.0
    %226 = vmatprep.subr.mxu0 0.0
    %227 = vmatpush2.msra.mxu0 0.0
    %228 = vmatprep.subr.mxu0 0.0
    %229 = vmatpush2.msra.mxu0 0.0
    %230 = vmatprep.subr.mxu0 0.0
    %231 = vmatpush2.msra.mxu0 0.0
    %232 = vmatprep.subr.mxu0 0.0
    %233 = vmatpush2.msra.mxu0 0.0
    %234 = vmatprep.subr.mxu0 0.0
    %235 = vmatpush2.msra.mxu0 0.0
    %236 = vmatprep.subr.mxu0 0.0
    %237 = vmatpush2.msra.mxu0 0.0
    %238 = vmatprep.subr.mxu0 0.0
    %239 = vmatpush2.msra.mxu0 0.0
    %240 = vmatprep.subr.mxu0 0.0
    %241 = vmatpush2.msra.mxu0 0.0
    %242 = vmatprep.subr.mxu0 0.0
    %243 = vmatpush2.msra.mxu0 0.0
    %244 = vmatprep.subr.mxu0 0.0
    %245 = vmatpush2.msra.mxu0 0.0
    %246 = vmatprep.subr.mxu0 0.0
    %247 = vmatpush2.msra.mxu0 0.0
    %248 = vmatprep.subr.mxu0 0.0
    %249 = vmatpush2.msra.mxu0 0.0
    %250 = vmatprep.subr.mxu0 0.0
    %251 = vmatpush2.msra.mxu0 0.0
    %252 = vmatprep.subr.mxu0 0.0
    %253 = vmatpush2.msra.mxu0 0.0
    %254 = vmatprep.mubr.f32.mxu0 0.0
    %255 = vmatmul.mubr.f32.gmra.mxu0 %v118
    %v256 = vpop.f32.mrf.mxu0
    %v257 = vadd.f32 0.0, %v256
    %v258 = vpop.f32.mrf.mxu0
    %v259 = vadd.f32 0.0, %v258
    %260 = vdwg.mxu0
    %v261 = vld [vmem:[#allocation2] sm:$0xff]
    %v262 = vld [vmem:[#allocation2 + $0x8] sm:$0xff]
    %v263 = vld [vmem:[#allocation2 + $0x10] sm:$0xff]
    %v264 = vld [vmem:[#allocation2 + $0x18] sm:$0xff]
    %v265 = vmul.f32 %v186, %v261
    %v266 = vmul.f32 %v188, %v262
    %v267 = vmul.f32 %v257, %v263
    %v268 = vmul.f32 %v259, %v264
    %v269 = vadd.f32 %v265, %v266
    %v270 = vadd.f32 %v269, %v267
    %v271 = vadd.f32 %v270, %v268
    %272 = vst [vmem:[#allocation8] sm:$0xff] %v271
    %273 = vmatprep.subr.mxu0 %v115
    %274 = vmatpush1.msra.mxu0 %v114
    %275 = vmatprep.subr.mxu0 %v111
    %276 = vmatpush1.msra.mxu0 %v110
    %277 = vmatprep.subr.mxu0 %v107
    %278 = vmatpush1.msra.mxu0 %v106
    %279 = vmatprep.subr.mxu0 %v103
    %280 = vmatpush1.msra.mxu0 %v102
    %281 = vmatprep.subr.mxu0 %v99
    %282 = vmatpush1.msra.mxu0 %v98
    %283 = vmatprep.subr.mxu0 %v95
    %284 = vmatpush1.msra.mxu0 %v94
    %285 = vmatprep.subr.mxu0 %v91
    %286 = vmatpush1.msra.mxu0 %v90
    %287 = vmatprep.subr.mxu0 %v87
    %288 = vmatpush1.msra.mxu0 %v86
    %289 = vmatprep.subr.mxu0 %v83
    %290 = vmatpush1.msra.mxu0 %v82
    %291 = vmatprep.subr.mxu0 %v79
    %292 = vmatpush1.msra.mxu0 %v78
    %293 = vmatprep.subr.mxu0 %v75
    %294 = vmatpush1.msra.mxu0 %v74
    %295 = vmatprep.subr.mxu0 %v71
    %296 = vmatpush1.msra.mxu0 %v70
    %297 = vmatprep.subr.mxu0 %v67
    %298 = vmatpush1.msra.mxu0 %v66
    %299 = vmatprep.subr.mxu0 %v63
    %300 = vmatpush1.msra.mxu0 %v62
    %301 = vmatprep.subr.mxu0 %v59
    %302 = vmatpush1.msra.mxu0 %v58
    %303 = vmatprep.subr.mxu0 %v55
    %304 = vmatpush1.msra.mxu0 %v54
    %305 = vmatprep.subr.mxu0 0.0
    %306 = vmatpush2.msra.mxu0 0.0
    %307 = vmatprep.subr.mxu0 0.0
    %308 = vmatpush2.msra.mxu0 0.0
    %309 = vmatprep.subr.mxu0 0.0
    %310 = vmatpush2.msra.mxu0 0.0
    %311 = vmatprep.subr.mxu0 0.0
    %312 = vmatpush2.msra.mxu0 0.0
    %313 = vmatprep.subr.mxu0 0.0
    %314 = vmatpush2.msra.mxu0 0.0
    %315 = vmatprep.subr.mxu0 0.0
    %316 = vmatpush2.msra.mxu0 0.0
    %317 = vmatprep.subr.mxu0 0.0
    %318 = vmatpush2.msra.mxu0 0.0
    %319 = vmatprep.subr.mxu0 0.0
    %320 = vmatpush2.msra.mxu0 0.0
    %321 = vmatprep.subr.mxu0 0.0
    %322 = vmatpush2.msra.mxu0 0.0
    %323 = vmatprep.subr.mxu0 0.0
    %324 = vmatpush2.msra.mxu0 0.0
    %325 = vmatprep.subr.mxu0 0.0
    %326 = vmatpush2.msra.mxu0 0.0
    %327 = vmatprep.subr.mxu0 0.0
    %328 = vmatpush2.msra.mxu0 0.0
    %329 = vmatprep.subr.mxu0 0.0
    %330 = vmatpush2.msra.mxu0 0.0
    %331 = vmatprep.subr.mxu0 0.0
    %332 = vmatpush2.msra.mxu0 0.0
    %333 = vmatprep.subr.mxu0 0.0
    %334 = vmatpush2.msra.mxu0 0.0
    %335 = vmatprep.subr.mxu0 0.0
    %336 = vmatpush2.msra.mxu0 0.0
    %337 = vmatprep.mubr.f32.mxu0 0.0
    %338 = vmatmul.mubr.f32.gmra.mxu0 %v271
    %v339 = vpop.f32.mrf.mxu0
    %v340 = vadd.f32 0.0, %v339
    %v341 = vpop.f32.mrf.mxu0
    %v342 = vadd.f32 0.0, %v341
    %343 = vdwg.mxu0
    %344 = vmatprep.subr.mxu0 %v117
    %345 = vmatpush1.msra.mxu0 %v116
    %346 = vmatprep.subr.mxu0 %v113
    %347 = vmatpush1.msra.mxu0 %v112
    %348 = vmatprep.subr.mxu0 %v109
    %349 = vmatpush1.msra.mxu0 %v108
    %350 = vmatprep.subr.mxu0 %v105
    %351 = vmatpush1.msra.mxu0 %v104
    %352 = vmatprep.subr.mxu0 %v101
    %353 = vmatpush1.msra.mxu0 %v100
    %354 = vmatprep.subr.mxu0 %v97
    %355 = vmatpush1.msra.mxu0 %v96
    %356 = vmatprep.subr.mxu0 %v93
    %357 = vmatpush1.msra.mxu0 %v92
    %358 = vmatprep.subr.mxu0 %v89
    %359 = vmatpush1.msra.mxu0 %v88
    %360 = vmatprep.subr.mxu0 %v85
    %361 = vmatpush1.msra.mxu0 %v84
    %362 = vmatprep.subr.mxu0 %v81
    %363 = vmatpush1.msra.mxu0 %v80
    %364 = vmatprep.subr.mxu0 %v77
    %365 = vmatpush1.msra.mxu0 %v76
    %366 = vmatprep.subr.mxu0 %v73
    %367 = vmatpush1.msra.mxu0 %v72
    %368 = vmatprep.subr.mxu0 %v69
    %369 = vmatpush1.msra.mxu0 %v68
    %370 = vmatprep.subr.mxu0 %v65
    %371 = vmatpush1.msra.mxu0 %v64
    %372 = vmatprep.subr.mxu0 %v61
    %373 = vmatpush1.msra.mxu0 %v60
    %374 = vmatprep.subr.mxu0 %v57
    %375 = vmatpush1.msra.mxu0 %v56
    %376 = vmatprep.subr.mxu0 0.0
    %377 = vmatpush2.msra.mxu0 0.0
    %378 = vmatprep.subr.mxu0 0.0
    %379 = vmatpush2.msra.mxu0 0.0
    %380 = vmatprep.subr.mxu0 0.0
    %381 = vmatpush2.msra.mxu0 0.0
    %382 = vmatprep.subr.mxu0 0.0
    %383 = vmatpush2.msra.mxu0 0.0
    %384 = vmatprep.subr.mxu0 0.0
    %385 = vmatpush2.msra.mxu0 0.0
    %386 = vmatprep.subr.mxu0 0.0
    %387 = vmatpush2.msra.mxu0 0.0
    %388 = vmatprep.subr.mxu0 0.0
    %389 = vmatpush2.msra.mxu0 0.0
    %390 = vmatprep.subr.mxu0 0.0
    %391 = vmatpush2.msra.mxu0 0.0
    %392 = vmatprep.subr.mxu0 0.0
    %393 = vmatpush2.msra.mxu0 0.0
    %394 = vmatprep.subr.mxu0 0.0
    %395 = vmatpush2.msra.mxu0 0.0
    %396 = vmatprep.subr.mxu0 0.0
    %397 = vmatpush2.msra.mxu0 0.0
    %398 = vmatprep.subr.mxu0 0.0
    %399 = vmatpush2.msra.mxu0 0.0
    %400 = vmatprep.subr.mxu0 0.0
    %401 = vmatpush2.msra.mxu0 0.0
    %402 = vmatprep.subr.mxu0 0.0
    %403 = vmatpush2.msra.mxu0 0.0
    %404 = vmatprep.subr.mxu0 0.0
    %405 = vmatpush2.msra.mxu0 0.0
    %406 = vmatprep.subr.mxu0 0.0
    %407 = vmatpush2.msra.mxu0 0.0
    %408 = vmatprep.mubr.f32.mxu0 0.0
    %409 = vmatmul.mubr.f32.gmra.mxu0 %v271
    %v410 = vpop.f32.mrf.mxu0
    %v411 = vadd.f32 0.0, %v410
    %v412 = vpop.f32.mrf.mxu0
    %v413 = vadd.f32 0.0, %v412
    %414 = vdwg.mxu0
    %s415 = scalar_lea.vmem [#allocation2], 32
    %v416 = vld [vmem:[%s415] sm:$0xff]
    %v417 = vld [vmem:[%s415 + $0x8] sm:$0xff]
    %v418 = vld [vmem:[%s415 + $0x10] sm:$0xff]
    %v419 = vld [vmem:[%s415 + $0x18] sm:$0xff]
    %v420 = vmul.f32 %v340, %v416
    %v421 = vmul.f32 %v342, %v417
    %v422 = vmul.f32 %v411, %v418
    %v423 = vmul.f32 %v413, %v419
    %v424 = vadd.f32 %v420, %v421
    %v425 = vadd.f32 %v424, %v422
    %v426 = vadd.f32 %v425, %v423
    %s427 = scalar_lea.vmem [#allocation8], 8
    %428 = vst [vmem:[%s427] sm:$0xff] %v426
    %429 = vmatprep.subr.mxu0 %v115
    %430 = vmatpush1.msra.mxu0 %v114
    %431 = vmatprep.subr.mxu0 %v111
    %432 = vmatpush1.msra.mxu0 %v110
    %433 = vmatprep.subr.mxu0 %v107
    %434 = vmatpush1.msra.mxu0 %v106
    %435 = vmatprep.subr.mxu0 %v103
    %436 = vmatpush1.msra.mxu0 %v102
    %437 = vmatprep.subr.mxu0 %v99
    %438 = vmatpush1.msra.mxu0 %v98
    %439 = vmatprep.subr.mxu0 %v95
    %440 = vmatpush1.msra.mxu0 %v94
    %441 = vmatprep.subr.mxu0 %v91
    %442 = vmatpush1.msra.mxu0 %v90
    %443 = vmatprep.subr.mxu0 %v87
    %444 = vmatpush1.msra.mxu0 %v86
    %445 = vmatprep.subr.mxu0 %v83
    %446 = vmatpush1.msra.mxu0 %v82
    %447 = vmatprep.subr.mxu0 %v79
    %448 = vmatpush1.msra.mxu0 %v78
    %449 = vmatprep.subr.mxu0 %v75
    %450 = vmatpush1.msra.mxu0 %v74
    %451 = vmatprep.subr.mxu0 %v71
    %452 = vmatpush1.msra.mxu0 %v70
    %453 = vmatprep.subr.mxu0 %v67
    %454 = vmatpush1.msra.mxu0 %v66
    %455 = vmatprep.subr.mxu0 %v63
    %456 = vmatpush1.msra.mxu0 %v62
    %457 = vmatprep.subr.mxu0 %v59
    %458 = vmatpush1.msra.mxu0 %v58
    %459 = vmatprep.subr.mxu0 %v55
    %460 = vmatpush1.msra.mxu0 %v54
    %461 = vmatprep.subr.mxu0 0.0
    %462 = vmatpush2.msra.mxu0 0.0
    %463 = vmatprep.subr.mxu0 0.0
    %464 = vmatpush2.msra.mxu0 0.0
    %465 = vmatprep.subr.mxu0 0.0
    %466 = vmatpush2.msra.mxu0 0.0
    %467 = vmatprep.subr.mxu0 0.0
    %468 = vmatpush2.msra.mxu0 0.0
    %469 = vmatprep.subr.mxu0 0.0
    %470 = vmatpush2.msra.mxu0 0.0
    %471 = vmatprep.subr.mxu0 0.0
    %472 = vmatpush2.msra.mxu0 0.0
    %473 = vmatprep.subr.mxu0 0.0
    %474 = vmatpush2.msra.mxu0 0.0
    %475 = vmatprep.subr.mxu0 0.0
    %476 = vmatpush2.msra.mxu0 0.0
    %477 = vmatprep.subr.mxu0 0.0
    %478 = vmatpush2.msra.mxu0 0.0
    %479 = vmatprep.subr.mxu0 0.0
    %480 = vmatpush2.msra.mxu0 0.0
    %481 = vmatprep.subr.mxu0 0.0
    %482 = vmatpush2.msra.mxu0 0.0
    %483 = vmatprep.subr.mxu0 0.0
    %484 = vmatpush2.msra.mxu0 0.0
    %485 = vmatprep.subr.mxu0 0.0
    %486 = vmatpush2.msra.mxu0 0.0
    %487 = vmatprep.subr.mxu0 0.0
    %488 = vmatpush2.msra.mxu0 0.0
    %489 = vmatprep.subr.mxu0 0.0
    %490 = vmatpush2.msra.mxu0 0.0
    %491 = vmatprep.subr.mxu0 0.0
    %492 = vmatpush2.msra.mxu0 0.0
    %493 = vmatprep.mubr.f32.mxu0 0.0
    %494 = vmatmul.mubr.f32.gmra.mxu0 %v426
    %v495 = vpop.f32.mrf.mxu0
    %v496 = vadd.f32 0.0, %v495
    %v497 = vpop.f32.mrf.mxu0
    %v498 = vadd.f32 0.0, %v497
    %499 = vdwg.mxu0
    %500 = vmatprep.subr.mxu0 %v117
    %501 = vmatpush1.msra.mxu0 %v116
    %502 = vmatprep.subr.mxu0 %v113
    %503 = vmatpush1.msra.mxu0 %v112
    %504 = vmatprep.subr.mxu0 %v109
    %505 = vmatpush1.msra.mxu0 %v108
    %506 = vmatprep.subr.mxu0 %v105
    %507 = vmatpush1.msra.mxu0 %v104
    %508 = vmatprep.subr.mxu0 %v101
    %509 = vmatpush1.msra.mxu0 %v100
    %510 = vmatprep.subr.mxu0 %v97
    %511 = vmatpush1.msra.mxu0 %v96
    %512 = vmatprep.subr.mxu0 %v93
    %513 = vmatpush1.msra.mxu0 %v92
    %514 = vmatprep.subr.mxu0 %v89
    %515 = vmatpush1.msra.mxu0 %v88
    %516 = vmatprep.subr.mxu0 %v85
    %517 = vmatpush1.msra.mxu0 %v84
    %518 = vmatprep.subr.mxu0 %v81
    %519 = vmatpush1.msra.mxu0 %v80
    %520 = vmatprep.subr.mxu0 %v77
    %521 = vmatpush1.msra.mxu0 %v76
    %522 = vmatprep.subr.mxu0 %v73
    %523 = vmatpush1.msra.mxu0 %v72
    %524 = vmatprep.subr.mxu0 %v69
    %525 = vmatpush1.msra.mxu0 %v68
    %526 = vmatprep.subr.mxu0 %v65
    %527 = vmatpush1.msra.mxu0 %v64
    %528 = vmatprep.subr.mxu0 %v61
    %529 = vmatpush1.msra.mxu0 %v60
    %530 = vmatprep.subr.mxu0 %v57
    %531 = vmatpush1.msra.mxu0 %v56
    %532 = vmatprep.subr.mxu0 0.0
    %533 = vmatpush2.msra.mxu0 0.0
    %534 = vmatprep.subr.mxu0 0.0
    %535 = vmatpush2.msra.mxu0 0.0
    %536 = vmatprep.subr.mxu0 0.0
    %537 = vmatpush2.msra.mxu0 0.0
    %538 = vmatprep.subr.mxu0 0.0
    %539 = vmatpush2.msra.mxu0 0.0
    %540 = vmatprep.subr.mxu0 0.0
    %541 = vmatpush2.msra.mxu0 0.0
    %542 = vmatprep.subr.mxu0 0.0
    %543 = vmatpush2.msra.mxu0 0.0
    %544 = vmatprep.subr.mxu0 0.0
    %545 = vmatpush2.msra.mxu0 0.0
    %546 = vmatprep.subr.mxu0 0.0
    %547 = vmatpush2.msra.mxu0 0.0
    %548 = vmatprep.subr.mxu0 0.0
    %549 = vmatpush2.msra.mxu0 0.0
    %550 = vmatprep.subr.mxu0 0.0
    %551 = vmatpush2.msra.mxu0 0.0
    %552 = vmatprep.subr.mxu0 0.0
    %553 = vmatpush2.msra.mxu0 0.0
    %554 = vmatprep.subr.mxu0 0.0
    %555 = vmatpush2.msra.mxu0 0.0
    %556 = vmatprep.subr.mxu0 0.0
    %557 = vmatpush2.msra.mxu0 0.0
    %558 = vmatprep.subr.mxu0 0.0
    %559 = vmatpush2.msra.mxu0 0.0
    %560 = vmatprep.subr.mxu0 0.0
    %561 = vmatpush2.msra.mxu0 0.0
    %562 = vmatprep.subr.mxu0 0.0
    %563 = vmatpush2.msra.mxu0 0.0
    %564 = vmatprep.mubr.f32.mxu0 0.0
    %565 = vmatmul.mubr.f32.gmra.mxu0 %v426
    %v566 = vpop.f32.mrf.mxu0
    %v567 = vadd.f32 0.0, %v566
    %v568 = vpop.f32.mrf.mxu0
    %v569 = vadd.f32 0.0, %v568
    %570 = vdwg.mxu0
    %s571 = scalar_lea.vmem [#allocation2], 64
    %v572 = vld [vmem:[%s571] sm:$0xff]
    %v573 = vld [vmem:[%s571 + $0x8] sm:$0xff]
    %v574 = vld [vmem:[%s571 + $0x10] sm:$0xff]
    %v575 = vld [vmem:[%s571 + $0x18] sm:$0xff]
    %v576 = vmul.f32 %v496, %v572
    %v577 = vmul.f32 %v498, %v573
    %v578 = vmul.f32 %v567, %v574
    %v579 = vmul.f32 %v569, %v575
    %v580 = vadd.f32 %v576, %v577
    %v581 = vadd.f32 %v580, %v578
    %v582 = vadd.f32 %v581, %v579
    %s583 = scalar_lea.vmem [#allocation8], 16
    %584 = vst [vmem:[%s583] sm:$0xff] %v582
    %585 = vmatprep.subr.mxu0 %v115
    %586 = vmatpush1.msra.mxu0 %v114
    %587 = vmatprep.subr.mxu0 %v111
    %588 = vmatpush1.msra.mxu0 %v110
    %589 = vmatprep.subr.mxu0 %v107
    %590 = vmatpush1.msra.mxu0 %v106
    %591 = vmatprep.subr.mxu0 %v103
    %592 = vmatpush1.msra.mxu0 %v102
    %593 = vmatprep.subr.mxu0 %v99
    %594 = vmatpush1.msra.mxu0 %v98
    %595 = vmatprep.subr.mxu0 %v95
    %596 = vmatpush1.msra.mxu0 %v94
    %597 = vmatprep.subr.mxu0 %v91
    %598 = vmatpush1.msra.mxu0 %v90
    %599 = vmatprep.subr.mxu0 %v87
    %600 = vmatpush1.msra.mxu0 %v86
    %601 = vmatprep.subr.mxu0 %v83
    %602 = vmatpush1.msra.mxu0 %v82
    %603 = vmatprep.subr.mxu0 %v79
    %604 = vmatpush1.msra.mxu0 %v78
    %605 = vmatprep.subr.mxu0 %v75
    %606 = vmatpush1.msra.mxu0 %v74
    %607 = vmatprep.subr.mxu0 %v71
    %608 = vmatpush1.msra.mxu0 %v70
    %609 = vmatprep.subr.mxu0 %v67
    %610 = vmatpush1.msra.mxu0 %v66
    %611 = vmatprep.subr.mxu0 %v63
    %612 = vmatpush1.msra.mxu0 %v62
    %613 = vmatprep.subr.mxu0 %v59
    %614 = vmatpush1.msra.mxu0 %v58
    %615 = vmatprep.subr.mxu0 %v55
    %616 = vmatpush1.msra.mxu0 %v54
    %617 = vmatprep.subr.mxu0 0.0
    %618 = vmatpush2.msra.mxu0 0.0
    %619 = vmatprep.subr.mxu0 0.0
    %620 = vmatpush2.msra.mxu0 0.0
    %621 = vmatprep.subr.mxu0 0.0
    %622 = vmatpush2.msra.mxu0 0.0
    %623 = vmatprep.subr.mxu0 0.0
    %624 = vmatpush2.msra.mxu0 0.0
    %625 = vmatprep.subr.mxu0 0.0
    %626 = vmatpush2.msra.mxu0 0.0
    %627 = vmatprep.subr.mxu0 0.0
    %628 = vmatpush2.msra.mxu0 0.0
    %629 = vmatprep.subr.mxu0 0.0
    %630 = vmatpush2.msra.mxu0 0.0
    %631 = vmatprep.subr.mxu0 0.0
    %632 = vmatpush2.msra.mxu0 0.0
    %633 = vmatprep.subr.mxu0 0.0
    %634 = vmatpush2.msra.mxu0 0.0
    %635 = vmatprep.subr.mxu0 0.0
    %636 = vmatpush2.msra.mxu0 0.0
    %637 = vmatprep.subr.mxu0 0.0
    %638 = vmatpush2.msra.mxu0 0.0
    %639 = vmatprep.subr.mxu0 0.0
    %640 = vmatpush2.msra.mxu0 0.0
    %641 = vmatprep.subr.mxu0 0.0
    %642 = vmatpush2.msra.mxu0 0.0
    %643 = vmatprep.subr.mxu0 0.0
    %644 = vmatpush2.msra.mxu0 0.0
    %645 = vmatprep.subr.mxu0 0.0
    %646 = vmatpush2.msra.mxu0 0.0
    %647 = vmatprep.subr.mxu0 0.0
    %648 = vmatpush2.msra.mxu0 0.0
    %649 = vmatprep.mubr.f32.mxu0 0.0
    %650 = vmatmul.mubr.f32.gmra.mxu0 %v582
    %v651 = vpop.f32.mrf.mxu0
    %v652 = vadd.f32 0.0, %v651
    %v653 = vpop.f32.mrf.mxu0
    %v654 = vadd.f32 0.0, %v653
    %655 = vdwg.mxu0
    %656 = vmatprep.subr.mxu0 %v117
    %657 = vmatpush1.msra.mxu0 %v116
    %658 = vmatprep.subr.mxu0 %v113
    %659 = vmatpush1.msra.mxu0 %v112
    %660 = vmatprep.subr.mxu0 %v109
    %661 = vmatpush1.msra.mxu0 %v108
    %662 = vmatprep.subr.mxu0 %v105
    %663 = vmatpush1.msra.mxu0 %v104
    %664 = vmatprep.subr.mxu0 %v101
    %665 = vmatpush1.msra.mxu0 %v100
    %666 = vmatprep.subr.mxu0 %v97
    %667 = vmatpush1.msra.mxu0 %v96
    %668 = vmatprep.subr.mxu0 %v93
    %669 = vmatpush1.msra.mxu0 %v92
    %670 = vmatprep.subr.mxu0 %v89
    %671 = vmatpush1.msra.mxu0 %v88
    %672 = vmatprep.subr.mxu0 %v85
    %673 = vmatpush1.msra.mxu0 %v84
    %674 = vmatprep.subr.mxu0 %v81
    %675 = vmatpush1.msra.mxu0 %v80
    %676 = vmatprep.subr.mxu0 %v77
    %677 = vmatpush1.msra.mxu0 %v76
    %678 = vmatprep.subr.mxu0 %v73
    %679 = vmatpush1.msra.mxu0 %v72
    %680 = vmatprep.subr.mxu0 %v69
    %681 = vmatpush1.msra.mxu0 %v68
    %682 = vmatprep.subr.mxu0 %v65
    %683 = vmatpush1.msra.mxu0 %v64
    %684 = vmatprep.subr.mxu0 %v61
    %685 = vmatpush1.msra.mxu0 %v60
    %686 = vmatprep.subr.mxu0 %v57
    %687 = vmatpush1.msra.mxu0 %v56
    %688 = vmatprep.subr.mxu0 0.0
    %689 = vmatpush2.msra.mxu0 0.0
    %690 = vmatprep.subr.mxu0 0.0
    %691 = vmatpush2.msra.mxu0 0.0
    %692 = vmatprep.subr.mxu0 0.0
    %693 = vmatpush2.msra.mxu0 0.0
    %694 = vmatprep.subr.mxu0 0.0
    %695 = vmatpush2.msra.mxu0 0.0
    %696 = vmatprep.subr.mxu0 0.0
    %697 = vmatpush2.msra.mxu0 0.0
    %698 = vmatprep.subr.mxu0 0.0
    %699 = vmatpush2.msra.mxu0 0.0
    %700 = vmatprep.subr.mxu0 0.0
    %701 = vmatpush2.msra.mxu0 0.0
    %702 = vmatprep.subr.mxu0 0.0
    %703 = vmatpush2.msra.mxu0 0.0
    %704 = vmatprep.subr.mxu0 0.0
    %705 = vmatpush2.msra.mxu0 0.0
    %706 = vmatprep.subr.mxu0 0.0
    %707 = vmatpush2.msra.mxu0 0.0
    %708 = vmatprep.subr.mxu0 0.0
    %709 = vmatpush2.msra.mxu0 0.0
    %710 = vmatprep.subr.mxu0 0.0
    %711 = vmatpush2.msra.mxu0 0.0
    %712 = vmatprep.subr.mxu0 0.0
    %713 = vmatpush2.msra.mxu0 0.0
    %714 = vmatprep.subr.mxu0 0.0
    %715 = vmatpush2.msra.mxu0 0.0
    %716 = vmatprep.subr.mxu0 0.0
    %717 = vmatpush2.msra.mxu0 0.0
    %718 = vmatprep.subr.mxu0 0.0
    %719 = vmatpush2.msra.mxu0 0.0
    %720 = vmatprep.mubr.f32.mxu0 0.0
    %721 = vmatmul.mubr.f32.gmra.mxu0 %v582
    %v722 = vpop.f32.mrf.mxu0
    %v723 = vadd.f32 0.0, %v722
    %v724 = vpop.f32.mrf.mxu0
    %v725 = vadd.f32 0.0, %v724
    %726 = vdwg.mxu0
    %s727 = scalar_lea.vmem [#allocation2], 96
    %v728 = vld [vmem:[%s727] sm:$0xff]
    %v729 = vld [vmem:[%s727 + $0x8] sm:$0xff]
    %v730 = vld [vmem:[%s727 + $0x10] sm:$0xff]
    %v731 = vld [vmem:[%s727 + $0x18] sm:$0xff]
    %v732 = vmul.f32 %v652, %v728
    %v733 = vmul.f32 %v654, %v729
    %v734 = vmul.f32 %v723, %v730
    %v735 = vmul.f32 %v725, %v731
    %v736 = vadd.f32 %v732, %v733
    %v737 = vadd.f32 %v736, %v734
    %v738 = vadd.f32 %v737, %v735
    %s739 = scalar_lea.vmem [#allocation8], 24
    %740 = vst [vmem:[%s739] sm:$0xff] %v738
    %741 = vmatprep.subr.mxu0 %v115
    %742 = vmatpush1.msra.mxu0 %v114
    %743 = vmatprep.subr.mxu0 %v111
    %744 = vmatpush1.msra.mxu0 %v110
    %745 = vmatprep.subr.mxu0 %v107
    %746 = vmatpush1.msra.mxu0 %v106
    %747 = vmatprep.subr.mxu0 %v103
    %748 = vmatpush1.msra.mxu0 %v102
    %749 = vmatprep.subr.mxu0 %v99
    %750 = vmatpush1.msra.mxu0 %v98
    %751 = vmatprep.subr.mxu0 %v95
    %752 = vmatpush1.msra.mxu0 %v94
    %753 = vmatprep.subr.mxu0 %v91
    %754 = vmatpush1.msra.mxu0 %v90
    %755 = vmatprep.subr.mxu0 %v87
    %756 = vmatpush1.msra.mxu0 %v86
    %757 = vmatprep.subr.mxu0 %v83
    %758 = vmatpush1.msra.mxu0 %v82
    %759 = vmatprep.subr.mxu0 %v79
    %760 = vmatpush1.msra.mxu0 %v78
    %761 = vmatprep.subr.mxu0 %v75
    %762 = vmatpush1.msra.mxu0 %v74
    %763 = vmatprep.subr.mxu0 %v71
    %764 = vmatpush1.msra.mxu0 %v70
    %765 = vmatprep.subr.mxu0 %v67
    %766 = vmatpush1.msra.mxu0 %v66
    %767 = vmatprep.subr.mxu0 %v63
    %768 = vmatpush1.msra.mxu0 %v62
    %769 = vmatprep.subr.mxu0 %v59
    %770 = vmatpush1.msra.mxu0 %v58
    %771 = vmatprep.subr.mxu0 %v55
    %772 = vmatpush1.msra.mxu0 %v54
    %773 = vmatprep.subr.mxu0 0.0
    %774 = vmatpush2.msra.mxu0 0.0
    %775 = vmatprep.subr.mxu0 0.0
    %776 = vmatpush2.msra.mxu0 0.0
    %777 = vmatprep.subr.mxu0 0.0
    %778 = vmatpush2.msra.mxu0 0.0
    %779 = vmatprep.subr.mxu0 0.0
    %780 = vmatpush2.msra.mxu0 0.0
    %781 = vmatprep.subr.mxu0 0.0
    %782 = vmatpush2.msra.mxu0 0.0
    %783 = vmatprep.subr.mxu0 0.0
    %784 = vmatpush2.msra.mxu0 0.0
    %785 = vmatprep.subr.mxu0 0.0
    %786 = vmatpush2.msra.mxu0 0.0
    %787 = vmatprep.subr.mxu0 0.0
    %788 = vmatpush2.msra.mxu0 0.0
    %789 = vmatprep.subr.mxu0 0.0
    %790 = vmatpush2.msra.mxu0 0.0
    %791 = vmatprep.subr.mxu0 0.0
    %792 = vmatpush2.msra.mxu0 0.0
    %793 = vmatprep.subr.mxu0 0.0
    %794 = vmatpush2.msra.mxu0 0.0
    %795 = vmatprep.subr.mxu0 0.0
    %796 = vmatpush2.msra.mxu0 0.0
    %797 = vmatprep.subr.mxu0 0.0
    %798 = vmatpush2.msra.mxu0 0.0
    %799 = vmatprep.subr.mxu0 0.0
    %800 = vmatpush2.msra.mxu0 0.0
    %801 = vmatprep.subr.mxu0 0.0
    %802 = vmatpush2.msra.mxu0 0.0
    %803 = vmatprep.subr.mxu0 0.0
    %804 = vmatpush2.msra.mxu0 0.0
    %805 = vmatprep.mubr.f32.mxu0 0.0
    %806 = vmatmul.mubr.f32.gmra.mxu0 %v738
    %v807 = vpop.f32.mrf.mxu0
    %v808 = vadd.f32 0.0, %v807
    %v809 = vpop.f32.mrf.mxu0
    %v810 = vadd.f32 0.0, %v809
    %811 = vdwg.mxu0
    %812 = vmatprep.subr.mxu0 %v117
    %813 = vmatpush1.msra.mxu0 %v116
    %814 = vmatprep.subr.mxu0 %v113
    %815 = vmatpush1.msra.mxu0 %v112
    %816 = vmatprep.subr.mxu0 %v109
    %817 = vmatpush1.msra.mxu0 %v108
    %818 = vmatprep.subr.mxu0 %v105
    %819 = vmatpush1.msra.mxu0 %v104
    %820 = vmatprep.subr.mxu0 %v101
    %821 = vmatpush1.msra.mxu0 %v100
    %822 = vmatprep.subr.mxu0 %v97
    %823 = vmatpush1.msra.mxu0 %v96
    %824 = vmatprep.subr.mxu0 %v93
    %825 = vmatpush1.msra.mxu0 %v92
    %826 = vmatprep.subr.mxu0 %v89
    %827 = vmatpush1.msra.mxu0 %v88
    %828 = vmatprep.subr.mxu0 %v85
    %829 = vmatpush1.msra.mxu0 %v84
    %830 = vmatprep.subr.mxu0 %v81
    %831 = vmatpush1.msra.mxu0 %v80
    %832 = vmatprep.subr.mxu0 %v77
    %833 = vmatpush1.msra.mxu0 %v76
    %834 = vmatprep.subr.mxu0 %v73
    %835 = vmatpush1.msra.mxu0 %v72
    %836 = vmatprep.subr.mxu0 %v69
    %837 = vmatpush1.msra.mxu0 %v68
    %838 = vmatprep.subr.mxu0 %v65
    %839 = vmatpush1.msra.mxu0 %v64
    %840 = vmatprep.subr.mxu0 %v61
    %841 = vmatpush1.msra.mxu0 %v60
    %842 = vmatprep.subr.mxu0 %v57
    %843 = vmatpush1.msra.mxu0 %v56
    %844 = vmatprep.subr.mxu0 0.0
    %845 = vmatpush2.msra.mxu0 0.0
    %846 = vmatprep.subr.mxu0 0.0
    %847 = vmatpush2.msra.mxu0 0.0
    %848 = vmatprep.subr.mxu0 0.0
    %849 = vmatpush2.msra.mxu0 0.0
    %850 = vmatprep.subr.mxu0 0.0
    %851 = vmatpush2.msra.mxu0 0.0
    %852 = vmatprep.subr.mxu0 0.0
    %853 = vmatpush2.msra.mxu0 0.0
    %854 = vmatprep.subr.mxu0 0.0
    %855 = vmatpush2.msra.mxu0 0.0
    %856 = vmatprep.subr.mxu0 0.0
    %857 = vmatpush2.msra.mxu0 0.0
    %858 = vmatprep.subr.mxu0 0.0
    %859 = vmatpush2.msra.mxu0 0.0
    %860 = vmatprep.subr.mxu0 0.0
    %861 = vmatpush2.msra.mxu0 0.0
    %862 = vmatprep.subr.mxu0 0.0
    %863 = vmatpush2.msra.mxu0 0.0
    %864 = vmatprep.subr.mxu0 0.0
    %865 = vmatpush2.msra.mxu0 0.0
    %866 = vmatprep.subr.mxu0 0.0
    %867 = vmatpush2.msra.mxu0 0.0
    %868 = vmatprep.subr.mxu0 0.0
    %869 = vmatpush2.msra.mxu0 0.0
    %870 = vmatprep.subr.mxu0 0.0
    %871 = vmatpush2.msra.mxu0 0.0
    %872 = vmatprep.subr.mxu0 0.0
    %873 = vmatpush2.msra.mxu0 0.0
    %874 = vmatprep.subr.mxu0 0.0
    %875 = vmatpush2.msra.mxu0 0.0
    %876 = vmatprep.mubr.f32.mxu0 0.0
    %877 = vmatmul.mubr.f32.gmra.mxu0 %v738
    %v878 = vpop.f32.mrf.mxu0
    %v879 = vadd.f32 0.0, %v878
    %v880 = vpop.f32.mrf.mxu0
    %v881 = vadd.f32 0.0, %v880
    %882 = vdwg.mxu0
    %s883 = scalar_lea.vmem [#allocation2], 128
    %v884 = vld [vmem:[%s883] sm:$0xff]
    %v885 = vld [vmem:[%s883 + $0x8] sm:$0xff]
    %v886 = vld [vmem:[%s883 + $0x10] sm:$0xff]
    %v887 = vld [vmem:[%s883 + $0x18] sm:$0xff]
    %v888 = vmul.f32 %v808, %v884
    %v889 = vmul.f32 %v810, %v885
    %v890 = vmul.f32 %v879, %v886
    %v891 = vmul.f32 %v881, %v887
    %v892 = vadd.f32 %v888, %v889
    %v893 = vadd.f32 %v892, %v890
    %v894 = vadd.f32 %v893, %v891
    %s895 = scalar_lea.vmem [#allocation8], 32
    %896 = vst [vmem:[%s895] sm:$0xff] %v894
    %897 = vmatprep.subr.mxu0 %v115
    %898 = vmatpush1.msra.mxu0 %v114
    %899 = vmatprep.subr.mxu0 %v111
    %900 = vmatpush1.msra.mxu0 %v110
    %901 = vmatprep.subr.mxu0 %v107
    %902 = vmatpush1.msra.mxu0 %v106
    %903 = vmatprep.subr.mxu0 %v103
    %904 = vmatpush1.msra.mxu0 %v102
    %905 = vmatprep.subr.mxu0 %v99
    %906 = vmatpush1.msra.mxu0 %v98
    %907 = vmatprep.subr.mxu0 %v95
    %908 = vmatpush1.msra.mxu0 %v94
    %909 = vmatprep.subr.mxu0 %v91
    %910 = vmatpush1.msra.mxu0 %v90
    %911 = vmatprep.subr.mxu0 %v87
    %912 = vmatpush1.msra.mxu0 %v86
    %913 = vmatprep.subr.mxu0 %v83
    %914 = vmatpush1.msra.mxu0 %v82
    %915 = vmatprep.subr.mxu0 %v79
    %916 = vmatpush1.msra.mxu0 %v78
    %917 = vmatprep.subr.mxu0 %v75
    %918 = vmatpush1.msra.mxu0 %v74
    %919 = vmatprep.subr.mxu0 %v71
    %920 = vmatpush1.msra.mxu0 %v70
    %921 = vmatprep.subr.mxu0 %v67
    %922 = vmatpush1.msra.mxu0 %v66
    %923 = vmatprep.subr.mxu0 %v63
    %924 = vmatpush1.msra.mxu0 %v62
    %925 = vmatprep.subr.mxu0 %v59
    %926 = vmatpush1.msra.mxu0 %v58
    %927 = vmatprep.subr.mxu0 %v55
    %928 = vmatpush1.msra.mxu0 %v54
    %929 = vmatprep.subr.mxu0 0.0
    %930 = vmatpush2.msra.mxu0 0.0
    %931 = vmatprep.subr.mxu0 0.0
    %932 = vmatpush2.msra.mxu0 0.0
    %933 = vmatprep.subr.mxu0 0.0
    %934 = vmatpush2.msra.mxu0 0.0
    %935 = vmatprep.subr.mxu0 0.0
    %936 = vmatpush2.msra.mxu0 0.0
    %937 = vmatprep.subr.mxu0 0.0
    %938 = vmatpush2.msra.mxu0 0.0
    %939 = vmatprep.subr.mxu0 0.0
    %940 = vmatpush2.msra.mxu0 0.0
    %941 = vmatprep.subr.mxu0 0.0
    %942 = vmatpush2.msra.mxu0 0.0
    %943 = vmatprep.subr.mxu0 0.0
    %944 = vmatpush2.msra.mxu0 0.0
    %945 = vmatprep.subr.mxu0 0.0
    %946 = vmatpush2.msra.mxu0 0.0
    %947 = vmatprep.subr.mxu0 0.0
    %948 = vmatpush2.msra.mxu0 0.0
    %949 = vmatprep.subr.mxu0 0.0
    %950 = vmatpush2.msra.mxu0 0.0
    %951 = vmatprep.subr.mxu0 0.0
    %952 = vmatpush2.msra.mxu0 0.0
    %953 = vmatprep.subr.mxu0 0.0
    %954 = vmatpush2.msra.mxu0 0.0
    %955 = vmatprep.subr.mxu0 0.0
    %956 = vmatpush2.msra.mxu0 0.0
    %957 = vmatprep.subr.mxu0 0.0
    %958 = vmatpush2.msra.mxu0 0.0
    %959 = vmatprep.subr.mxu0 0.0
    %960 = vmatpush2.msra.mxu0 0.0
    %961 = vmatprep.mubr.f32.mxu0 0.0
    %962 = vmatmul.mubr.f32.gmra.mxu0 %v894
    %v963 = vpop.f32.mrf.mxu0
    %v964 = vadd.f32 0.0, %v963
    %v965 = vpop.f32.mrf.mxu0
    %v966 = vadd.f32 0.0, %v965
    %967 = vdwg.mxu0
    %968 = vmatprep.subr.mxu0 %v117
    %969 = vmatpush1.msra.mxu0 %v116
    %970 = vmatprep.subr.mxu0 %v113
    %971 = vmatpush1.msra.mxu0 %v112
    %972 = vmatprep.subr.mxu0 %v109
    %973 = vmatpush1.msra.mxu0 %v108
    %974 = vmatprep.subr.mxu0 %v105
    %975 = vmatpush1.msra.mxu0 %v104
    %976 = vmatprep.subr.mxu0 %v101
    %977 = vmatpush1.msra.mxu0 %v100
    %978 = vmatprep.subr.mxu0 %v97
    %979 = vmatpush1.msra.mxu0 %v96
    %980 = vmatprep.subr.mxu0 %v93
    %981 = vmatpush1.msra.mxu0 %v92
    %982 = vmatprep.subr.mxu0 %v89
    %983 = vmatpush1.msra.mxu0 %v88
    %984 = vmatprep.subr.mxu0 %v85
    %985 = vmatpush1.msra.mxu0 %v84
    %986 = vmatprep.subr.mxu0 %v81
    %987 = vmatpush1.msra.mxu0 %v80
    %988 = vmatprep.subr.mxu0 %v77
    %989 = vmatpush1.msra.mxu0 %v76
    %990 = vmatprep.subr.mxu0 %v73
    %991 = vmatpush1.msra.mxu0 %v72
    %992 = vmatprep.subr.mxu0 %v69
    %993 = vmatpush1.msra.mxu0 %v68
    %994 = vmatprep.subr.mxu0 %v65
    %995 = vmatpush1.msra.mxu0 %v64
    %996 = vmatprep.subr.mxu0 %v61
    %997 = vmatpush1.msra.mxu0 %v60
    %998 = vmatprep.subr.mxu0 %v57
    %999 = vmatpush1.msra.mxu0 %v56
    %1000 = vmatprep.subr.mxu0 0.0
    %1001 = vmatpush2.msra.mxu0 0.0
    %1002 = vmatprep.subr.mxu0 0.0
    %1003 = vmatpush2.msra.mxu0 0.0
    %1004 = vmatprep.subr.mxu0 0.0
    %1005 = vmatpush2.msra.mxu0 0.0
    %1006 = vmatprep.subr.mxu0 0.0
    %1007 = vmatpush2.msra.mxu0 0.0
    %1008 = vmatprep.subr.mxu0 0.0
    %1009 = vmatpush2.msra.mxu0 0.0
    %1010 = vmatprep.subr.mxu0 0.0
    %1011 = vmatpush2.msra.mxu0 0.0
    %1012 = vmatprep.subr.mxu0 0.0
    %1013 = vmatpush2.msra.mxu0 0.0
    %1014 = vmatprep.subr.mxu0 0.0
    %1015 = vmatpush2.msra.mxu0 0.0
    %1016 = vmatprep.subr.mxu0 0.0
    %1017 = vmatpush2.msra.mxu0 0.0
    %1018 = vmatprep.subr.mxu0 0.0
    %1019 = vmatpush2.msra.mxu0 0.0
    %1020 = vmatprep.subr.mxu0 0.0
    %1021 = vmatpush2.msra.mxu0 0.0
    %1022 = vmatprep.subr.mxu0 0.0
    %1023 = vmatpush2.msra.mxu0 0.0
    %1024 = vmatprep.subr.mxu0 0.0
    %1025 = vmatpush2.msra.mxu0 0.0
    %1026 = vmatprep.subr.mxu0 0.0
    %1027 = vmatpush2.msra.mxu0 0.0
    %1028 = vmatprep.subr.mxu0 0.0
    %1029 = vmatpush2.msra.mxu0 0.0
    %1030 = vmatprep.subr.mxu0 0.0
    %1031 = vmatpush2.msra.mxu0 0.0
    %1032 = vmatprep.mubr.f32.mxu0 0.0
    %1033 = vmatmul.mubr.f32.gmra.mxu0 %v894
    %v1034 = vpop.f32.mrf.mxu0
    %v1035 = vadd.f32 0.0, %v1034
    %v1036 = vpop.f32.mrf.mxu0
    %v1037 = vadd.f32 0.0, %v1036
    %1038 = vdwg.mxu0
    %s1039 = scalar_lea.vmem [#allocation2], 160
    %v1040 = vld [vmem:[%s1039] sm:$0xff]
    %v1041 = vld [vmem:[%s1039 + $0x8] sm:$0xff]
    %v1042 = vld [vmem:[%s1039 + $0x10] sm:$0xff]
    %v1043 = vld [vmem:[%s1039 + $0x18] sm:$0xff]
    %v1044 = vmul.f32 %v964, %v1040
    %v1045 = vmul.f32 %v966, %v1041
    %v1046 = vmul.f32 %v1035, %v1042
    %v1047 = vmul.f32 %v1037, %v1043
    %v1048 = vadd.f32 %v1044, %v1045
    %v1049 = vadd.f32 %v1048, %v1046
    %v1050 = vadd.f32 %v1049, %v1047
    %s1051 = scalar_lea.vmem [#allocation8], 40
    %1052 = vst [vmem:[%s1051] sm:$0xff] %v1050
    %1053 = vmatprep.subr.mxu0 %v115
    %1054 = vmatpush1.msra.mxu0 %v114
    %1055 = vmatprep.subr.mxu0 %v111
    %1056 = vmatpush1.msra.mxu0 %v110
    %1057 = vmatprep.subr.mxu0 %v107
    %1058 = vmatpush1.msra.mxu0 %v106
    %1059 = vmatprep.subr.mxu0 %v103
    %1060 = vmatpush1.msra.mxu0 %v102
    %1061 = vmatprep.subr.mxu0 %v99
    %1062 = vmatpush1.msra.mxu0 %v98
    %1063 = vmatprep.subr.mxu0 %v95
    %1064 = vmatpush1.msra.mxu0 %v94
    %1065 = vmatprep.subr.mxu0 %v91
    %1066 = vmatpush1.msra.mxu0 %v90
    %1067 = vmatprep.subr.mxu0 %v87
    %1068 = vmatpush1.msra.mxu0 %v86
    %1069 = vmatprep.subr.mxu0 %v83
    %1070 = vmatpush1.msra.mxu0 %v82
    %1071 = vmatprep.subr.mxu0 %v79
    %1072 = vmatpush1.msra.mxu0 %v78
    %1073 = vmatprep.subr.mxu0 %v75
    %1074 = vmatpush1.msra.mxu0 %v74
    %1075 = vmatprep.subr.mxu0 %v71
    %1076 = vmatpush1.msra.mxu0 %v70
    %1077 = vmatprep.subr.mxu0 %v67
    %1078 = vmatpush1.msra.mxu0 %v66
    %1079 = vmatprep.subr.mxu0 %v63
    %1080 = vmatpush1.msra.mxu0 %v62
    %1081 = vmatprep.subr.mxu0 %v59
    %1082 = vmatpush1.msra.mxu0 %v58
    %1083 = vmatprep.subr.mxu0 %v55
    %1084 = vmatpush1.msra.mxu0 %v54
    %1085 = vmatprep.subr.mxu0 0.0
    %1086 = vmatpush2.msra.mxu0 0.0
    %1087 = vmatprep.subr.mxu0 0.0
    %1088 = vmatpush2.msra.mxu0 0.0
    %1089 = vmatprep.subr.mxu0 0.0
    %1090 = vmatpush2.msra.mxu0 0.0
    %1091 = vmatprep.subr.mxu0 0.0
    %1092 = vmatpush2.msra.mxu0 0.0
    %1093 = vmatprep.subr.mxu0 0.0
    %1094 = vmatpush2.msra.mxu0 0.0
    %1095 = vmatprep.subr.mxu0 0.0
    %1096 = vmatpush2.msra.mxu0 0.0
    %1097 = vmatprep.subr.mxu0 0.0
    %1098 = vmatpush2.msra.mxu0 0.0
    %1099 = vmatprep.subr.mxu0 0.0
    %1100 = vmatpush2.msra.mxu0 0.0
    %1101 = vmatprep.subr.mxu0 0.0
    %1102 = vmatpush2.msra.mxu0 0.0
    %1103 = vmatprep.subr.mxu0 0.0
    %1104 = vmatpush2.msra.mxu0 0.0
    %1105 = vmatprep.subr.mxu0 0.0
    %1106 = vmatpush2.msra.mxu0 0.0
    %1107 = vmatprep.subr.mxu0 0.0
    %1108 = vmatpush2.msra.mxu0 0.0
    %1109 = vmatprep.subr.mxu0 0.0
    %1110 = vmatpush2.msra.mxu0 0.0
    %1111 = vmatprep.subr.mxu0 0.0
    %1112 = vmatpush2.msra.mxu0 0.0
    %1113 = vmatprep.subr.mxu0 0.0
    %1114 = vmatpush2.msra.mxu0 0.0
    %1115 = vmatprep.subr.mxu0 0.0
    %1116 = vmatpush2.msra.mxu0 0.0
    %1117 = vmatprep.mubr.f32.mxu0 0.0
    %1118 = vmatmul.mubr.f32.gmra.mxu0 %v1050
    %v1119 = vpop.f32.mrf.mxu0
    %v1120 = vadd.f32 0.0, %v1119
    %v1121 = vpop.f32.mrf.mxu0
    %v1122 = vadd.f32 0.0, %v1121
    %1123 = vdwg.mxu0
    %1124 = vmatprep.subr.mxu0 %v117
    %1125 = vmatpush1.msra.mxu0 %v116
    %1126 = vmatprep.subr.mxu0 %v113
    %1127 = vmatpush1.msra.mxu0 %v112
    %1128 = vmatprep.subr.mxu0 %v109
    %1129 = vmatpush1.msra.mxu0 %v108
    %1130 = vmatprep.subr.mxu0 %v105
    %1131 = vmatpush1.msra.mxu0 %v104
    %1132 = vmatprep.subr.mxu0 %v101
    %1133 = vmatpush1.msra.mxu0 %v100
    %1134 = vmatprep.subr.mxu0 %v97
    %1135 = vmatpush1.msra.mxu0 %v96
    %1136 = vmatprep.subr.mxu0 %v93
    %1137 = vmatpush1.msra.mxu0 %v92
    %1138 = vmatprep.subr.mxu0 %v89
    %1139 = vmatpush1.msra.mxu0 %v88
    %1140 = vmatprep.subr.mxu0 %v85
    %1141 = vmatpush1.msra.mxu0 %v84
    %1142 = vmatprep.subr.mxu0 %v81
    %1143 = vmatpush1.msra.mxu0 %v80
    %1144 = vmatprep.subr.mxu0 %v77
    %1145 = vmatpush1.msra.mxu0 %v76
    %1146 = vmatprep.subr.mxu0 %v73
    %1147 = vmatpush1.msra.mxu0 %v72
    %1148 = vmatprep.subr.mxu0 %v69
    %1149 = vmatpush1.msra.mxu0 %v68
    %1150 = vmatprep.subr.mxu0 %v65
    %1151 = vmatpush1.msra.mxu0 %v64
    %1152 = vmatprep.subr.mxu0 %v61
    %1153 = vmatpush1.msra.mxu0 %v60
    %1154 = vmatprep.subr.mxu0 %v57
    %1155 = vmatpush1.msra.mxu0 %v56
    %1156 = vmatprep.subr.mxu0 0.0
    %1157 = vmatpush2.msra.mxu0 0.0
    %1158 = vmatprep.subr.mxu0 0.0
    %1159 = vmatpush2.msra.mxu0 0.0
    %1160 = vmatprep.subr.mxu0 0.0
    %1161 = vmatpush2.msra.mxu0 0.0
    %1162 = vmatprep.subr.mxu0 0.0
    %1163 = vmatpush2.msra.mxu0 0.0
    %1164 = vmatprep.subr.mxu0 0.0
    %1165 = vmatpush2.msra.mxu0 0.0
    %1166 = vmatprep.subr.mxu0 0.0
    %1167 = vmatpush2.msra.mxu0 0.0
    %1168 = vmatprep.subr.mxu0 0.0
    %1169 = vmatpush2.msra.mxu0 0.0
    %1170 = vmatprep.subr.mxu0 0.0
    %1171 = vmatpush2.msra.mxu0 0.0
    %1172 = vmatprep.subr.mxu0 0.0
    %1173 = vmatpush2.msra.mxu0 0.0
    %1174 = vmatprep.subr.mxu0 0.0
    %1175 = vmatpush2.msra.mxu0 0.0
    %1176 = vmatprep.subr.mxu0 0.0
    %1177 = vmatpush2.msra.mxu0 0.0
    %1178 = vmatprep.subr.mxu0 0.0
    %1179 = vmatpush2.msra.mxu0 0.0
    %1180 = vmatprep.subr.mxu0 0.0
    %1181 = vmatpush2.msra.mxu0 0.0
    %1182 = vmatprep.subr.mxu0 0.0
    %1183 = vmatpush2.msra.mxu0 0.0
    %1184 = vmatprep.subr.mxu0 0.0
    %1185 = vmatpush2.msra.mxu0 0.0
    %1186 = vmatprep.subr.mxu0 0.0
    %1187 = vmatpush2.msra.mxu0 0.0
    %1188 = vmatprep.mubr.f32.mxu0 0.0
    %1189 = vmatmul.mubr.f32.gmra.mxu0 %v1050
    %v1190 = vpop.f32.mrf.mxu0
    %v1191 = vadd.f32 0.0, %v1190
    %v1192 = vpop.f32.mrf.mxu0
    %v1193 = vadd.f32 0.0, %v1192
    %1194 = vdwg.mxu0
    %s1195 = scalar_lea.vmem [#allocation2], 192
    %v1196 = vld [vmem:[%s1195] sm:$0xff]
    %v1197 = vld [vmem:[%s1195 + $0x8] sm:$0xff]
    %v1198 = vld [vmem:[%s1195 + $0x10] sm:$0xff]
    %v1199 = vld [vmem:[%s1195 + $0x18] sm:$0xff]
    %v1200 = vmul.f32 %v1120, %v1196
    %v1201 = vmul.f32 %v1122, %v1197
    %v1202 = vmul.f32 %v1191, %v1198
    %v1203 = vmul.f32 %v1193, %v1199
    %v1204 = vadd.f32 %v1200, %v1201
    %v1205 = vadd.f32 %v1204, %v1202
    %v1206 = vadd.f32 %v1205, %v1203
    %s1207 = scalar_lea.vmem [#allocation8], 48
    %1208 = vst [vmem:[%s1207] sm:$0xff] %v1206
    %1209 = vmatprep.subr.mxu0 %v115
    %1210 = vmatpush1.msra.mxu0 %v114
    %1211 = vmatprep.subr.mxu0 %v111
    %1212 = vmatpush1.msra.mxu0 %v110
    %1213 = vmatprep.subr.mxu0 %v107
    %1214 = vmatpush1.msra.mxu0 %v106
    %1215 = vmatprep.subr.mxu0 %v103
    %1216 = vmatpush1.msra.mxu0 %v102
    %1217 = vmatprep.subr.mxu0 %v99
    %1218 = vmatpush1.msra.mxu0 %v98
    %1219 = vmatprep.subr.mxu0 %v95
    %1220 = vmatpush1.msra.mxu0 %v94
    %1221 = vmatprep.subr.mxu0 %v91
    %1222 = vmatpush1.msra.mxu0 %v90
    %1223 = vmatprep.subr.mxu0 %v87
    %1224 = vmatpush1.msra.mxu0 %v86
    %1225 = vmatprep.subr.mxu0 %v83
    %1226 = vmatpush1.msra.mxu0 %v82
    %1227 = vmatprep.subr.mxu0 %v79
    %1228 = vmatpush1.msra.mxu0 %v78
    %1229 = vmatprep.subr.mxu0 %v75
    %1230 = vmatpush1.msra.mxu0 %v74
    %1231 = vmatprep.subr.mxu0 %v71
    %1232 = vmatpush1.msra.mxu0 %v70
    %1233 = vmatprep.subr.mxu0 %v67
    %1234 = vmatpush1.msra.mxu0 %v66
    %1235 = vmatprep.subr.mxu0 %v63
    %1236 = vmatpush1.msra.mxu0 %v62
    %1237 = vmatprep.subr.mxu0 %v59
    %1238 = vmatpush1.msra.mxu0 %v58
    %1239 = vmatprep.subr.mxu0 %v55
    %1240 = vmatpush1.msra.mxu0 %v54
    %1241 = vmatprep.subr.mxu0 0.0
    %1242 = vmatpush2.msra.mxu0 0.0
    %1243 = vmatprep.subr.mxu0 0.0
    %1244 = vmatpush2.msra.mxu0 0.0
    %1245 = vmatprep.subr.mxu0 0.0
    %1246 = vmatpush2.msra.mxu0 0.0
    %1247 = vmatprep.subr.mxu0 0.0
    %1248 = vmatpush2.msra.mxu0 0.0
    %1249 = vmatprep.subr.mxu0 0.0
    %1250 = vmatpush2.msra.mxu0 0.0
    %1251 = vmatprep.subr.mxu0 0.0
    %1252 = vmatpush2.msra.mxu0 0.0
    %1253 = vmatprep.subr.mxu0 0.0
    %1254 = vmatpush2.msra.mxu0 0.0
    %1255 = vmatprep.subr.mxu0 0.0
    %1256 = vmatpush2.msra.mxu0 0.0
    %1257 = vmatprep.subr.mxu0 0.0
    %1258 = vmatpush2.msra.mxu0 0.0
    %1259 = vmatprep.subr.mxu0 0.0
    %1260 = vmatpush2.msra.mxu0 0.0
    %1261 = vmatprep.subr.mxu0 0.0
    %1262 = vmatpush2.msra.mxu0 0.0
    %1263 = vmatprep.subr.mxu0 0.0
    %1264 = vmatpush2.msra.mxu0 0.0
    %1265 = vmatprep.subr.mxu0 0.0
    %1266 = vmatpush2.msra.mxu0 0.0
    %1267 = vmatprep.subr.mxu0 0.0
    %1268 = vmatpush2.msra.mxu0 0.0
    %1269 = vmatprep.subr.mxu0 0.0
    %1270 = vmatpush2.msra.mxu0 0.0
    %1271 = vmatprep.subr.mxu0 0.0
    %1272 = vmatpush2.msra.mxu0 0.0
    %1273 = vmatprep.mubr.f32.mxu0 0.0
    %1274 = vmatmul.mubr.f32.gmra.mxu0 %v1206
    %v1275 = vpop.f32.mrf.mxu0
    %v1276 = vadd.f32 0.0, %v1275
    %v1277 = vpop.f32.mrf.mxu0
    %v1278 = vadd.f32 0.0, %v1277
    %1279 = vdwg.mxu0
    %1280 = vmatprep.subr.mxu0 %v117
    %1281 = vmatpush1.msra.mxu0 %v116
    %1282 = vmatprep.subr.mxu0 %v113
    %1283 = vmatpush1.msra.mxu0 %v112
    %1284 = vmatprep.subr.mxu0 %v109
    %1285 = vmatpush1.msra.mxu0 %v108
    %1286 = vmatprep.subr.mxu0 %v105
    %1287 = vmatpush1.msra.mxu0 %v104
    %1288 = vmatprep.subr.mxu0 %v101
    %1289 = vmatpush1.msra.mxu0 %v100
    %1290 = vmatprep.subr.mxu0 %v97
    %1291 = vmatpush1.msra.mxu0 %v96
    %1292 = vmatprep.subr.mxu0 %v93
    %1293 = vmatpush1.msra.mxu0 %v92
    %1294 = vmatprep.subr.mxu0 %v89
    %1295 = vmatpush1.msra.mxu0 %v88
    %1296 = vmatprep.subr.mxu0 %v85
    %1297 = vmatpush1.msra.mxu0 %v84
    %1298 = vmatprep.subr.mxu0 %v81
    %1299 = vmatpush1.msra.mxu0 %v80
    %1300 = vmatprep.subr.mxu0 %v77
    %1301 = vmatpush1.msra.mxu0 %v76
    %1302 = vmatprep.subr.mxu0 %v73
    %1303 = vmatpush1.msra.mxu0 %v72
    %1304 = vmatprep.subr.mxu0 %v69
    %1305 = vmatpush1.msra.mxu0 %v68
    %1306 = vmatprep.subr.mxu0 %v65
    %1307 = vmatpush1.msra.mxu0 %v64
    %1308 = vmatprep.subr.mxu0 %v61
    %1309 = vmatpush1.msra.mxu0 %v60
    %1310 = vmatprep.subr.mxu0 %v57
    %1311 = vmatpush1.msra.mxu0 %v56
    %1312 = vmatprep.subr.mxu0 0.0
    %1313 = vmatpush2.msra.mxu0 0.0
    %1314 = vmatprep.subr.mxu0 0.0
    %1315 = vmatpush2.msra.mxu0 0.0
    %1316 = vmatprep.subr.mxu0 0.0
    %1317 = vmatpush2.msra.mxu0 0.0
    %1318 = vmatprep.subr.mxu0 0.0
    %1319 = vmatpush2.msra.mxu0 0.0
    %1320 = vmatprep.subr.mxu0 0.0
    %1321 = vmatpush2.msra.mxu0 0.0
    %1322 = vmatprep.subr.mxu0 0.0
    %1323 = vmatpush2.msra.mxu0 0.0
    %1324 = vmatprep.subr.mxu0 0.0
    %1325 = vmatpush2.msra.mxu0 0.0
    %1326 = vmatprep.subr.mxu0 0.0
    %1327 = vmatpush2.msra.mxu0 0.0
    %1328 = vmatprep.subr.mxu0 0.0
    %1329 = vmatpush2.msra.mxu0 0.0
    %1330 = vmatprep.subr.mxu0 0.0
    %1331 = vmatpush2.msra.mxu0 0.0
    %1332 = vmatprep.subr.mxu0 0.0
    %1333 = vmatpush2.msra.mxu0 0.0
    %1334 = vmatprep.subr.mxu0 0.0
    %1335 = vmatpush2.msra.mxu0 0.0
    %1336 = vmatprep.subr.mxu0 0.0
    %1337 = vmatpush2.msra.mxu0 0.0
    %1338 = vmatprep.subr.mxu0 0.0
    %1339 = vmatpush2.msra.mxu0 0.0
    %1340 = vmatprep.subr.mxu0 0.0
    %1341 = vmatpush2.msra.mxu0 0.0
    %1342 = vmatprep.subr.mxu0 0.0
    %1343 = vmatpush2.msra.mxu0 0.0
    %1344 = vmatprep.mubr.f32.mxu0 0.0
    %1345 = vmatmul.mubr.f32.gmra.mxu0 %v1206
    %v1346 = vpop.f32.mrf.mxu0
    %v1347 = vadd.f32 0.0, %v1346
    %v1348 = vpop.f32.mrf.mxu0
    %v1349 = vadd.f32 0.0, %v1348
    %1350 = vdwg.mxu0
    %s1351 = scalar_lea.vmem [#allocation2], 224
    %v1352 = vld [vmem:[%s1351] sm:$0xff]
    %v1353 = vld [vmem:[%s1351 + $0x8] sm:$0xff]
    %v1354 = vld [vmem:[%s1351 + $0x10] sm:$0xff]
    %v1355 = vld [vmem:[%s1351 + $0x18] sm:$0xff]
    %v1356 = vmul.f32 %v1276, %v1352
    %v1357 = vmul.f32 %v1278, %v1353
    %v1358 = vmul.f32 %v1347, %v1354
    %v1359 = vmul.f32 %v1349, %v1355
    %v1360 = vadd.f32 %v1356, %v1357
    %v1361 = vadd.f32 %v1360, %v1358
    %v1362 = vadd.f32 %v1361, %v1359
    %s1363 = scalar_lea.vmem [#allocation8], 56
    %1364 = vst [vmem:[%s1363] sm:$0xff] %v1362
    // Predicated region
    $region26: #{tpu_custom_call.1} parent=1 // pred_check
      _
    $region27: #{tpu_custom_call.1} parent=1 // pred_check_branch
      %1366 = sbr.rel (0) target = $region29
    $region28: #{tpu_custom_call.1} parent=1 // pred_region
      %s1368 = ssub.s32 1024, 1024
      %1369 = vsyncadd [#allocation4], %s1368
      %s1370 = sshll.u32 [#allocation8], 4
      %s1371 = int_to_ptr.vmem [resolvable:$true] %s1370
      %1376 = dma.vmem_to_hbm [thread:$0]  %s1371, 1024, %s3, [#allocation4], 128, 128, 8
    $region29: #{tpu_custom_call.1} parent=1 // pred_fallthru
      _
    // Predicated region
    $region30: #{tpu_custom_call.1} parent=1 // pred_check
      _
    $region31: #{tpu_custom_call.1} parent=1 // pred_check_branch
      %1378 = sbr.rel (0) target = $region33
    $region32: #{tpu_custom_call.1} parent=1 // pred_region
      %1379 = dma.done [#allocation4], 1024
    $region33: #{tpu_custom_call.1} parent=1 // pred_fallthru
      _
    %1380 = vsyncpa [#allocation3], 1
    %1381 = vsyncpa [#allocation6], 1
    %1382 = vsyncpa [#allocation4], 1

</llo_original>
